<compile_context>
chip_gen: v7x
topology: tpu7x:2x2x1
jax: 0.10.0
libtpu: 0.0.40
codegen_flags: <defaults>
</compile_context>

<pallas_src>
import jax
import jax.numpy as jnp
from jax.experimental import pallas as pl
from jax.experimental.pallas import tpu as pltpu

# Scoped-VMEM budget: above the v5e (16 MiB) / v6e,v7x (32 MiB) defaults,
# comfortably under v7x's 64 MiB physical with headroom.
_VMEM_LIMIT_BYTES = 48 * 1024 * 1024


def _pick_tile(n, pref, quantum=1):
    """Largest divisor of n that is <= pref, preferring multiples of `quantum`
    (sublane/lane alignment).  Never silently returns a non-divisor."""
    pref = min(pref, n)
    best = None
    for d in range(pref, 0, -1):
        if n % d == 0:
            if d % quantum == 0:
                return d
            if best is None:
                best = d
    return best if best is not None else n


# ---------------------------------------------------------------------------
# Generic tiled linear kernel: Y = X @ W + b.
#   row_major grid = (M//tm, N//tn):  X row tile stays resident, W re-streams.
#   col_major grid = (N//tn, M//tm):  W column tile stays resident (use when W
#   is the big HBM-bound operand, e.g. the vocab projection).
# ---------------------------------------------------------------------------
def _linear_kernel(x_ref, w_ref, b_ref, o_ref):
    acc = jnp.dot(x_ref[...], w_ref[...], preferred_element_type=jnp.float32)
    o_ref[...] = (acc + b_ref[...]).astype(o_ref.dtype)


def linear_pallas(x, w, b, out_dtype, tm_pref=512, tn_pref=2048, col_major=False):
    M, K = x.shape
    N = w.shape[1]
    tm = _pick_tile(M, tm_pref, 8)
    tn = _pick_tile(N, tn_pref, 128)
    if col_major:
        grid = (N // tn, M // tm)
        x_spec = pl.BlockSpec((tm, K), lambda j, i: (i, 0))
        w_spec = pl.BlockSpec((K, tn), lambda j, i: (0, j))
        b_spec = pl.BlockSpec((1, tn), lambda j, i: (0, j))
        o_spec = pl.BlockSpec((tm, tn), lambda j, i: (i, j))
    else:
        grid = (M // tm, N // tn)
        x_spec = pl.BlockSpec((tm, K), lambda i, j: (i, 0))
        w_spec = pl.BlockSpec((K, tn), lambda i, j: (0, j))
        b_spec = pl.BlockSpec((1, tn), lambda i, j: (0, j))
        o_spec = pl.BlockSpec((tm, tn), lambda i, j: (i, j))
    return pl.pallas_call(
        _linear_kernel,
        out_shape=jax.ShapeDtypeStruct((M, N), out_dtype),
        grid_spec=pltpu.PrefetchScalarGridSpec(
            num_scalar_prefetch=0,
            grid=grid,
            in_specs=[x_spec, w_spec, b_spec],
            out_specs=o_spec,
        ),
        compiler_params=pltpu.CompilerParams(
            dimension_semantics=("parallel", "parallel"),
            vmem_limit_bytes=_VMEM_LIMIT_BYTES),
    )(x, w, b)


# ---------------------------------------------------------------------------
# LSTM recurrence kernel.
#   grid = (B//bb, T//Tc); batch "parallel" (megacore), time "arbitrary".
#   gates_x = x@W_ih + (b_ih+b_hh) is precomputed (bf16); only h@W_hh runs
#   here.  h/c carried in f32 VMEM scratch across the sequential time axis.
# ---------------------------------------------------------------------------
def _lstm_kernel(gx_ref, h0_ref, c0_ref, whh_ref, out_ref, hn_ref, cn_ref,
                 h_sc, c_sc):
    t_blk = pl.program_id(1)

    @pl.when(t_blk == 0)
    def _():
        h_sc[...] = h0_ref[...].astype(jnp.float32)
        c_sc[...] = c0_ref[...].astype(jnp.float32)

    H = h_sc.shape[-1]
    Tc = gx_ref.shape[0]

    def step(t, carry):
        h, c = carry
        gates = (gx_ref[t].astype(jnp.float32)
                 + jnp.dot(h.astype(jnp.bfloat16), whh_ref[...],
                           preferred_element_type=jnp.float32))       # (bb,4H)
        # Gate slices are lane-aligned when H % 128 == 0 (production sizes).
        i_g = jax.nn.sigmoid(gates[:, 0 * H:1 * H])
        f_g = jax.nn.sigmoid(gates[:, 1 * H:2 * H])
        g_g = jnp.tanh(gates[:, 2 * H:3 * H])
        o_g = jax.nn.sigmoid(gates[:, 3 * H:4 * H])
        c_new = f_g * c + i_g * g_g
        h_new = o_g * jnp.tanh(c_new)
        out_ref[t] = h_new.astype(out_ref.dtype)
        return (h_new, c_new)

    h_f, c_f = jax.lax.fori_loop(0, Tc, step, (h_sc[...], c_sc[...]),
                                 unroll=(Tc <= 8))
    h_sc[...] = h_f
    c_sc[...] = c_f

    @pl.when(t_blk == pl.num_programs(1) - 1)
    def _():
        hn_ref[...] = h_f.astype(hn_ref.dtype)
        cn_ref[...] = c_f.astype(cn_ref.dtype)


def _lstm_batch_tile(B):
    # Big batch tile: the per-step cost is dominated by streaming W_hh through
    # the MXU (~constant in bb), so feed it as many rows as possible.
    bb = _pick_tile(B, 256, 8)
    # v7x megacore: keep >=2 grid steps on the "parallel" batch axis when that
    # does not shrink the MXU row tile below 128.
    if B // bb < 2 and bb >= 256 and bb % 2 == 0:
        bb //= 2
    return bb


def _lstm_time_chunk(T, bb, G):
    # Keep the double-buffered bf16 gx tile under ~8 MiB so gx + W_hh + out
    # tiles stay inside the scoped-VMEM budget (tight on v7x's 64 MiB).
    budget = 8 * 1024 * 1024
    tc_max = max(1, budget // (2 * bb * G * 2))
    return _pick_tile(T, min(16, tc_max))


def lstm_pallas(gates_x, h0, c0, whh_bf):
    T, B, G = gates_x.shape            # G = 4H, gates_x is bf16
    H = whh_bf.shape[0]
    bb = _lstm_batch_tile(B)
    tc = _lstm_time_chunk(T, bb, G)
    grid = (B // bb, T // tc)

    # Invariant weight: its block index never changes, so when it is large,
    # single-buffer it instead of burning a second VMEM copy.
    whh_kwargs = {}
    if H * G * 2 >= (2 << 20):
        whh_kwargs["pipeline_mode"] = pl.Buffered(1)

    grid_spec = pltpu.PrefetchScalarGridSpec(
        num_scalar_prefetch=0,
        grid=grid,
        in_specs=[
            pl.BlockSpec((tc, bb, G), lambda b, t: (t, b, 0)),
            pl.BlockSpec((bb, H), lambda b, t: (b, 0)),
            pl.BlockSpec((bb, H), lambda b, t: (b, 0)),
            pl.BlockSpec((H, G), lambda b, t: (0, 0), **whh_kwargs),
        ],
        out_specs=(
            pl.BlockSpec((tc, bb, H), lambda b, t: (t, b, 0)),
            pl.BlockSpec((bb, H), lambda b, t: (b, 0)),
            pl.BlockSpec((bb, H), lambda b, t: (b, 0)),
        ),
        scratch_shapes=[pltpu.VMEM((bb, H), jnp.float32),
                        pltpu.VMEM((bb, H), jnp.float32)],
    )
    out_shape = (
        jax.ShapeDtypeStruct((T, B, H), jnp.bfloat16),   # all hidden states
        jax.ShapeDtypeStruct((B, H), jnp.float32),       # h_n
        jax.ShapeDtypeStruct((B, H), jnp.float32),       # c_n
    )
    return pl.pallas_call(
        _lstm_kernel,
        out_shape=out_shape,
        grid_spec=grid_spec,
        compiler_params=pltpu.CompilerParams(
            dimension_semantics=("parallel", "arbitrary"),
            vmem_limit_bytes=_VMEM_LIMIT_BYTES),
    )(gates_x, h0, c0, whh_bf)


# ---------------------------------------------------------------------------
# Fused GlobalAttention kernel (linear_in + score + softmax + context +
# linear_out + tanh) per (batch element, query tile).  All math is 2-D: the
# batch dim is squeezed out of the blocks (leading None block dim).
# ---------------------------------------------------------------------------
def _attention_kernel(dec_ref, ctx_ref, win_ref, wc_ref, wd_ref, b_ref, o_ref):
    dec = dec_ref[...]                       # (tq, H) bf16 decoder states
    ctx = ctx_ref[...]                       # (S,  H) bf16 encoder context
    # linear_in (no bias)
    ht = jnp.dot(dec, win_ref[...], preferred_element_type=jnp.float32)
    # score: ht @ ctx^T (contraction over the feature dim of both operands)
    align = jax.lax.dot_general(ht.astype(jnp.bfloat16), ctx,
                                (((1,), (1,)), ((), ())),
                                preferred_element_type=jnp.float32)   # (tq, S)
    m = jnp.max(align, axis=-1, keepdims=True)
    e = jnp.exp(align - m)
    p = e * pl.reciprocal(jnp.sum(e, axis=-1, keepdims=True), approx=True)
    # context vector
    c = jnp.dot(p.astype(jnp.bfloat16), ctx,
                preferred_element_type=jnp.float32)                   # (tq, H)
    # linear_out on concat([c, dec]) split into two matmuls, then tanh
    acc = (jnp.dot(c.astype(jnp.bfloat16), wc_ref[...],
                   preferred_element_type=jnp.float32)
           + jnp.dot(dec, wd_ref[...], preferred_element_type=jnp.float32)
           + b_ref[...])
    o_ref[...] = jnp.tanh(acc).astype(o_ref.dtype)


def attention_pallas(dec_b, ctx_b, win_bf, wc_bf, wd_bf, b_out):
    # TODO(synk): for very long S, loop over S tiles with an online max/sum
    # instead of materializing the full (tq, S) align block.
    B, T, H = dec_b.shape
    S = ctx_b.shape[1]
    tq = _pick_tile(T, 128, 8)
    grid = (B, T // tq)
    return pl.pallas_call(
        _attention_kernel,
        out_shape=jax.ShapeDtypeStruct((B, T, H), jnp.bfloat16),
        grid_spec=pltpu.PrefetchScalarGridSpec(
            num_scalar_prefetch=0,
            grid=grid,
            in_specs=[
                pl.BlockSpec((None, tq, H), lambda b, t: (b, t, 0)),
                pl.BlockSpec((None, S, H), lambda b, t: (b, 0, 0)),
                pl.BlockSpec((H, H), lambda b, t: (0, 0)),
                pl.BlockSpec((H, H), lambda b, t: (0, 0)),
                pl.BlockSpec((H, H), lambda b, t: (0, 0)),
                pl.BlockSpec((1, H), lambda b, t: (0, 0)),
            ],
            out_specs=pl.BlockSpec((None, tq, H), lambda b, t: (b, t, 0)),
        ),
        compiler_params=pltpu.CompilerParams(
            dimension_semantics=("parallel", "parallel"),
            vmem_limit_bytes=_VMEM_LIMIT_BYTES),
    )(dec_b, ctx_b, win_bf, wc_bf, wd_bf, b_out)


# ---------------------------------------------------------------------------
# One-time parameter preparation (transposes / bias fold / bf16 casts hoisted
# OUT of the per-call forward path).
# ---------------------------------------------------------------------------
def prepare_params(params):
    H = params["w_hh"].shape[1]
    wout_t = params["w_out"].T                                   # (2H, H)
    return {
        "emb_bf": params["embedding"].astype(jnp.bfloat16),      # (V, D)
        "wih_bf": params["w_ih"].T.astype(jnp.bfloat16),         # (D, 4H)
        "whh_bf": params["w_hh"].T.astype(jnp.bfloat16),         # (H, 4H)
        "b_gates": (params["b_ih"] + params["b_hh"])[None, :].astype(jnp.float32),
        "win_bf": params["w_in"].T.astype(jnp.bfloat16),         # (H, H)
        "woutc_bf": wout_t[:H, :].astype(jnp.bfloat16),          # acts on c
        "woutd_bf": wout_t[H:, :].astype(jnp.bfloat16),          # acts on dec h
        "b_out": params["b_out"][None, :].astype(jnp.float32),
        "wvoc_bf": params["w_voc"].T.astype(jnp.bfloat16),       # (H, V)
        "b_voc": params["b_voc"][None, :].astype(jnp.float32),
    }


# ---------------------------------------------------------------------------
# Full forward.
# ---------------------------------------------------------------------------
@jax.jit
def lstm_decoder_forward(prep, tokens, h0, c0, context, context_lengths=None):
    # TODO(synk): context_lengths is accepted but unused, matching the PyTorch
    # GlobalAttention.forward which never masks with it. Dropout is identity.
    B, T = tokens.shape
    D = prep["emb_bf"].shape[1]
    H = prep["whh_bf"].shape[0]
    V = prep["wvoc_bf"].shape[1]

    # Embedding gather directly in time-major layout (T, B, D).
    emb_t = prep["emb_bf"][tokens.T]                              # (T, B, D) bf16

    # 1) Hoisted input projection, ONE big MXU matmul; gx kept in bf16 to
    #    halve its HBM write+read and its VMEM tile in the recurrence.
    gx = linear_pallas(emb_t.reshape(T * B, D), prep["wih_bf"], prep["b_gates"],
                       jnp.bfloat16).reshape(T, B, 4 * H)

    # 2) Sequential recurrence (only h @ W_hh inside the loop).
    dec_tbh, h_n, c_n = lstm_pallas(gx, h0[0], c0[0], prep["whh_bf"])

    # 3) Fused linear_in + attention + linear_out per (batch, T-tile).
    # TODO(synk): the batch-major transposes below could be removed by blocking
    # the time-major layout directly once sub-sublane (1-wide) second-minor
    # blocks are safe; kept in XLA for robustness.
    dec_b = jnp.transpose(dec_tbh, (1, 0, 2))                     # (B, T, H) bf16
    ctx_b = jnp.transpose(context, (1, 0, 2)).astype(jnp.bfloat16)  # (B, S, H)
    attn_b = attention_pallas(dec_b, ctx_b, prep["win_bf"], prep["woutc_bf"],
                              prep["woutd_bf"], prep["b_out"])    # (B, T, H) bf16

    # 4) Vocab projection on time-major rows; V-tiles are the OUTER grid axis
    #    so W_voc streams from HBM once; logits emitted in bf16.
    attn_flat = jnp.transpose(attn_b, (1, 0, 2)).reshape(T * B, H)
    logits = linear_pallas(attn_flat, prep["wvoc_bf"], prep["b_voc"],
                           jnp.bfloat16, tm_pref=512, tn_pref=2048,
                           col_major=True).reshape(T, B, V)

    return logits, (h_n[None], c_n[None])


# ---------------------------------------------------------------------------
# Pure-JAX f32 reference (for correctness check).
# ---------------------------------------------------------------------------
def reference_forward(params, tokens, h0, c0, context):
    emb = params["embedding"][tokens]
    emb_t = jnp.transpose(emb, (1, 0, 2))

    def step(carry, x):
        h, c = carry
        gates = (x @ params["w_ih"].T + params["b_ih"]
                 + h @ params["w_hh"].T + params["b_hh"])
        i, f, g, o = jnp.split(gates, 4, axis=-1)
        i, f, o = jax.nn.sigmoid(i), jax.nn.sigmoid(f), jax.nn.sigmoid(o)
        g = jnp.tanh(g)
        c_new = f * c + i * g
        h_new = o * jnp.tanh(c_new)
        return (h_new, c_new), h_new

    (h_n, c_n), dec = jax.lax.scan(step, (h0[0], c0[0]), emb_t)
    dec_b = jnp.transpose(dec, (1, 0, 2))
    ctx_b = jnp.transpose(context, (1, 0, 2))
    ht = dec_b @ params["w_in"].T
    align = jnp.einsum("btd,bsd->bts", ht, ctx_b)
    p = jax.nn.softmax(align, axis=-1)
    c = jnp.einsum("bts,bsd->btd", p, ctx_b)
    concat = jnp.concatenate([c, dec_b], axis=-1)
    attn_h = jnp.tanh(concat @ params["w_out"].T + params["b_out"])
    out = attn_h @ params["w_voc"].T + params["b_voc"]
    return jnp.transpose(out, (1, 0, 2)), (h_n[None], c_n[None])


# ---------------------------------------------------------------------------
if __name__ == "__main__":
    VOCAB, D, H = 16, 32, 32          # vocab_size, input_dim, hidden_dim
    NUM_LAYER = 1                     # single layer, unidirectional
    B, T, S = 2, 8, 8                 # batch, tgt_len, src_len

    key = jax.random.PRNGKey(0)
    ks = jax.random.split(key, 12)
    scale = 0.1
    params = {
        "embedding": scale * jax.random.normal(ks[0], (VOCAB, D), jnp.float32),
        "w_ih": scale * jax.random.normal(ks[1], (4 * H, D), jnp.float32),
        "w_hh": scale * jax.random.normal(ks[2], (4 * H, H), jnp.float32),
        "b_ih": scale * jax.random.normal(ks[3], (4 * H,), jnp.float32),
        "b_hh": scale * jax.random.normal(ks[4], (4 * H,), jnp.float32),
        "w_in": scale * jax.random.normal(ks[5], (H, H), jnp.float32),       # linear_in (no bias)
        "w_out": scale * jax.random.normal(ks[6], (H, 2 * H), jnp.float32),  # attention linear_out
        "b_out": scale * jax.random.normal(ks[7], (H,), jnp.float32),
        "w_voc": scale * jax.random.normal(ks[8], (VOCAB, H), jnp.float32),  # final linear_out
        "b_voc": scale * jax.random.normal(ks[9], (VOCAB,), jnp.float32),
    }

    tokens = jax.random.randint(ks[10], (B, T), 0, VOCAB, dtype=jnp.int32)
    h0 = scale * jax.random.normal(ks[11], (NUM_LAYER, B, H), jnp.float32)
    c0 = jnp.zeros((NUM_LAYER, B, H), jnp.float32)
    context = scale * jax.random.normal(jax.random.PRNGKey(1), (S, B, H), jnp.float32)
    context_lengths = jnp.full((B,), S, dtype=jnp.int32)

    prep = prepare_params(params)
    outputs, (h_n, c_n) = lstm_decoder_forward(
        prep, tokens, h0, c0, context, context_lengths)
    jax.block_until_ready((outputs, h_n, c_n))

    ref_out, (ref_h, ref_c) = reference_forward(params, tokens, h0, c0, context)
    assert outputs.shape == (T, B, VOCAB)
    assert h_n.shape == (NUM_LAYER, B, H) and c_n.shape == (NUM_LAYER, B, H)
    assert jnp.allclose(outputs.astype(jnp.float32), ref_out, atol=2e-2, rtol=2e-2)
    assert jnp.allclose(h_n, ref_h, atol=2e-2, rtol=2e-2)
    assert jnp.allclose(c_n, ref_c, atol=2e-2, rtol=2e-2)

    print("KERNEL_OK")
</pallas_src>

<mosaic_0001>
module attributes {stable_mosaic.version = 11 : i64} {
  func.func @_linear_kernel(%arg0: i32, %arg1: i32, %arg2: memref<16x32xbf16, #tpu.memory_space<vmem>>, %arg3: memref<32x128xbf16, #tpu.memory_space<vmem>>, %arg4: memref<1x128xf32, #tpu.memory_space<vmem>>, %arg5: memref<16x128xbf16, #tpu.memory_space<vmem>>) attributes {dimension_semantics = [#tpu.dimension_semantics<parallel>, #tpu.dimension_semantics<parallel>], iteration_bounds = array<i64: 1, 1>, scalar_prefetch = 0 : i64, scratch_operands = 0 : i64, tpu.core_type = #tpu.core_type<tc>, window_params = [{transform_indices = @transform_0, window_bounds = array<i64: 16, 32>}, {transform_indices = @transform_1, window_bounds = array<i64: 32, 128>}, {transform_indices = @transform_2, window_bounds = array<i64: 1, 128>}, {transform_indices = @transform_3, window_bounds = array<i64: 16, 128>}]} {
    %c0 = arith.constant 0 : index
    %c0_0 = arith.constant 0 : index
    %0 = vector.load %arg2[%c0, %c0_0] : memref<16x32xbf16, #tpu.memory_space<vmem>>, vector<16x32xbf16>
    %c0_1 = arith.constant 0 : index
    %c0_2 = arith.constant 0 : index
    %1 = vector.load %arg3[%c0_1, %c0_2] : memref<32x128xbf16, #tpu.memory_space<vmem>>, vector<32x128xbf16>
    %cst = arith.constant dense<0.000000e+00> : vector<16x128xf32>
    %2 = tpu.matmul %0, %1, %cst {dimension_numbers = #tpu.dot_dimension_numbers<[1], [0], [0], [1], [0, 0, 1, 1], [], []>} : vector<16x32xbf16>, vector<32x128xbf16>, vector<16x128xf32> -> vector<16x128xf32>
    %c0_3 = arith.constant 0 : index
    %c0_4 = arith.constant 0 : index
    %3 = vector.load %arg4[%c0_3, %c0_4] : memref<1x128xf32, #tpu.memory_space<vmem>>, vector<1x128xf32>
    %4 = vector.broadcast %3 : vector<1x128xf32> to vector<16x128xf32>
    %5 = arith.addf %2, %4 : vector<16x128xf32>
    %6 = arith.truncf %5 : vector<16x128xf32> to vector<16x128xbf16>
    %c0_5 = arith.constant 0 : index
    %c0_6 = arith.constant 0 : index
    %7 = vector.load %arg5[%c0_5, %c0_6] : memref<16x128xbf16, #tpu.memory_space<vmem>>, vector<16x128xbf16>
    tpu.vector_store %arg5[%c0_5, %c0_6], %6 {strides = array<i32>} : memref<16x128xbf16, #tpu.memory_space<vmem>>, vector<16x128xbf16>,
    return
  }
  func.func @transform_0(%arg0: i32, %arg1: i32) -> (i32, i32) {
    %c0_i32 = arith.constant 0 : i32
    %c0_i32_0 = arith.constant 0 : i32
    return %arg0, %c0_i32 : i32, i32
  }
  func.func @transform_1(%arg0: i32, %arg1: i32) -> (i32, i32) {
    %c0_i32 = arith.constant 0 : i32
    %c0_i32_0 = arith.constant 0 : i32
    return %c0_i32, %arg1 : i32, i32
  }
  func.func @transform_2(%arg0: i32, %arg1: i32) -> (i32, i32) {
    %c0_i32 = arith.constant 0 : i32
    %c0_i32_0 = arith.constant 0 : i32
    return %c0_i32, %arg1 : i32, i32
  }
  func.func @transform_3(%arg0: i32, %arg1: i32) -> (i32, i32) {
    %c0_i32 = arith.constant 0 : i32
    return %arg0, %arg1 : i32, i32
  }
}

module attributes {stable_mosaic.version = 11 : i64} {
  func.func @_lstm_kernel(%arg0: i32, %arg1: i32, %arg2: memref<8x2x128xbf16, #tpu.memory_space<vmem>>, %arg3: memref<2x32xf32, #tpu.memory_space<vmem>>, %arg4: memref<2x32xf32, #tpu.memory_space<vmem>>, %arg5: memref<32x128xbf16, #tpu.memory_space<vmem>>, %arg6: memref<8x2x32xbf16, #tpu.memory_space<vmem>>, %arg7: memref<2x32xf32, #tpu.memory_space<vmem>>, %arg8: memref<2x32xf32, #tpu.memory_space<vmem>>, %arg9: memref<2x32xf32, #tpu.memory_space<vmem>>, %arg10: memref<2x32xf32, #tpu.memory_space<vmem>>) attributes {dimension_semantics = [#tpu.dimension_semantics<parallel>, #tpu.dimension_semantics<arbitrary>], iteration_bounds = array<i64: 1, 1>, scalar_prefetch = 0 : i64, scratch_operands = 2 : i64, tpu.core_type = #tpu.core_type<tc>, window_params = [{transform_indices = @transform_0, window_bounds = array<i64: 8, 2, 128>}, {transform_indices = @transform_1, window_bounds = array<i64: 2, 32>}, {transform_indices = @transform_2, window_bounds = array<i64: 2, 32>}, {pipeline_mode = #tpu.pipeline_mode<synchronous>, transform_indices = @transform_3, window_bounds = array<i64: 32, 128>}, {transform_indices = @transform_4, window_bounds = array<i64: 8, 2, 32>}, {transform_indices = @transform_5, window_bounds = array<i64: 2, 32>}, {transform_indices = @transform_6, window_bounds = array<i64: 2, 32>}]} {
    %c0_i32 = arith.constant 0 : i32
    %0 = arith.cmpi eq, %arg1, %c0_i32 : i32
    %1 = arith.extui %0 : i1 to i32
    %c0_i32_0 = arith.constant 0 : i32
    %2 = arith.cmpi ne, %1, %c0_i32_0 : i32
    scf.if %2 {
      %c0_90 = arith.constant 0 : index
      %c0_91 = arith.constant 0 : index
      %314 = vector.load %arg3[%c0_90, %c0_91] : memref<2x32xf32, #tpu.memory_space<vmem>>, vector<2x32xf32>
      %c0_92 = arith.constant 0 : index
      %c0_93 = arith.constant 0 : index
      %315 = vector.load %arg9[%c0_92, %c0_93] : memref<2x32xf32, #tpu.memory_space<vmem>>, vector<2x32xf32>
      tpu.vector_store %arg9[%c0_92, %c0_93], %314 {strides = array<i32>} : memref<2x32xf32, #tpu.memory_space<vmem>>, vector<2x32xf32>,
      %c0_94 = arith.constant 0 : index
      %c0_95 = arith.constant 0 : index
      %316 = vector.load %arg4[%c0_94, %c0_95] : memref<2x32xf32, #tpu.memory_space<vmem>>, vector<2x32xf32>
      %c0_96 = arith.constant 0 : index
      %c0_97 = arith.constant 0 : index
      %317 = vector.load %arg10[%c0_96, %c0_97] : memref<2x32xf32, #tpu.memory_space<vmem>>, vector<2x32xf32>
      tpu.vector_store %arg10[%c0_96, %c0_97], %316 {strides = array<i32>} : memref<2x32xf32, #tpu.memory_space<vmem>>, vector<2x32xf32>,
    } else {
    }
    %c0 = arith.constant 0 : index
    %c0_1 = arith.constant 0 : index
    %3 = vector.load %arg9[%c0, %c0_1] : memref<2x32xf32, #tpu.memory_space<vmem>>, vector<2x32xf32>
    %c0_2 = arith.constant 0 : index
    %c0_3 = arith.constant 0 : index
    %4 = vector.load %arg10[%c0_2, %c0_3] : memref<2x32xf32, #tpu.memory_space<vmem>>, vector<2x32xf32>
    %c0_i32_4 = arith.constant 0 : i32
    %5 = arith.index_cast %c0_i32_4 : i32 to index
    %c0_5 = arith.constant 0 : index
    %c0_6 = arith.constant 0 : index
    %6 = vector.load %arg2[%5, %c0_5, %c0_6] : memref<8x2x128xbf16, #tpu.memory_space<vmem>>, vector<1x2x128xbf16>
    %7 = vector.shape_cast %6 : vector<1x2x128xbf16> to vector<2x128xbf16>
    %8 = arith.extf %7 : vector<2x128xbf16> to vector<2x128xf32>
    %9 = arith.truncf %3 : vector<2x32xf32> to vector<2x32xbf16>
    %c0_7 = arith.constant 0 : index
    %c0_8 = arith.constant 0 : index
    %10 = vector.load %arg5[%c0_7, %c0_8] : memref<32x128xbf16, #tpu.memory_space<vmem>>, vector<32x128xbf16>
    %cst = arith.constant dense<0.000000e+00> : vector<2x128xf32>
    %11 = tpu.matmul %9, %10, %cst {dimension_numbers = #tpu.dot_dimension_numbers<[1], [0], [0], [1], [0, 0, 1, 1], [], []>} : vector<2x32xbf16>, vector<32x128xbf16>, vector<2x128xf32> -> vector<2x128xf32>
    %12 = arith.addf %8, %11 : vector<2x128xf32>
    %13 = vector.extract_strided_slice %12 {offsets = [0, 0], sizes = [2, 32], strides = [1, 1]} : vector<2x128xf32> to vector<2x32xf32>
    %14 = arith.negf %13 : vector<2x32xf32>
    %15 = math.exp %14 : vector<2x32xf32>
    %cst_9 = arith.constant 1.000000e+00 : f32
    %16 = vector.broadcast %cst_9 : f32 to vector<2x32xf32>
    %17 = arith.addf %16, %15 : vector<2x32xf32>
    %18 = arith.divf %16, %17 : vector<2x32xf32>
    %19 = vector.extract_strided_slice %12 {offsets = [0, 32], sizes = [2, 32], strides = [1, 1]} : vector<2x128xf32> to vector<2x32xf32>
    %20 = arith.negf %19 : vector<2x32xf32>
    %21 = math.exp %20 : vector<2x32xf32>
    %cst_10 = arith.constant 1.000000e+00 : f32
    %22 = vector.broadcast %cst_10 : f32 to vector<2x32xf32>
    %23 = arith.addf %22, %21 : vector<2x32xf32>
    %24 = arith.divf %22, %23 : vector<2x32xf32>
    %25 = vector.extract_strided_slice %12 {offsets = [0, 64], sizes = [2, 32], strides = [1, 1]} : vector<2x128xf32> to vector<2x32xf32>
    %26 = math.tanh %25 : vector<2x32xf32>
    %27 = vector.extract_strided_slice %12 {offsets = [0, 96], sizes = [2, 32], strides = [1, 1]} : vector<2x128xf32> to vector<2x32xf32>
    %28 = arith.negf %27 : vector<2x32xf32>
    %29 = math.exp %28 : vector<2x32xf32>
    %cst_11 = arith.constant 1.000000e+00 : f32
    %30 = vector.broadcast %cst_11 : f32 to vector<2x32xf32>
    %31 = arith.addf %30, %29 : vector<2x32xf32>
    %32 = arith.divf %30, %31 : vector<2x32xf32>
    %33 = arith.mulf %24, %4 : vector<2x32xf32>
    %34 = arith.mulf %18, %26 : vector<2x32xf32>
    %35 = arith.addf %33, %34 : vector<2x32xf32>
    %36 = math.tanh %35 : vector<2x32xf32>
    %37 = arith.mulf %32, %36 : vector<2x32xf32>
    %38 = arith.truncf %37 : vector<2x32xf32> to vector<2x32xbf16>
    %39 = arith.index_cast %c0_i32_4 : i32 to index
    %c0_12 = arith.constant 0 : index
    %c0_13 = arith.constant 0 : index
    %40 = vector.load %arg6[%39, %c0_12, %c0_13] : memref<8x2x32xbf16, #tpu.memory_space<vmem>>, vector<1x2x32xbf16>
    %41 = vector.shape_cast %40 : vector<1x2x32xbf16> to vector<2x32xbf16>
    %42 = vector.shape_cast %38 : vector<2x32xbf16> to vector<1x2x32xbf16>
    tpu.vector_store %arg6[%39, %c0_12, %c0_13], %42 {strides = array<i32>} : memref<8x2x32xbf16, #tpu.memory_space<vmem>>, vector<1x2x32xbf16>,
    %c1_i32 = arith.constant 1 : i32
    %43 = arith.index_cast %c1_i32 : i32 to index
    %c0_14 = arith.constant 0 : index
    %c0_15 = arith.constant 0 : index
    %44 = vector.load %arg2[%43, %c0_14, %c0_15] : memref<8x2x128xbf16, #tpu.memory_space<vmem>>, vector<1x2x128xbf16>
    %45 = vector.shape_cast %44 : vector<1x2x128xbf16> to vector<2x128xbf16>
    %46 = arith.extf %45 : vector<2x128xbf16> to vector<2x128xf32>
    %47 = arith.truncf %37 : vector<2x32xf32> to vector<2x32xbf16>
    %c0_16 = arith.constant 0 : index
    %c0_17 = arith.constant 0 : index
    %48 = vector.load %arg5[%c0_16, %c0_17] : memref<32x128xbf16, #tpu.memory_space<vmem>>, vector<32x128xbf16>
    %cst_18 = arith.constant dense<0.000000e+00> : vector<2x128xf32>
    %49 = tpu.matmul %47, %48, %cst_18 {dimension_numbers = #tpu.dot_dimension_numbers<[1], [0], [0], [1], [0, 0, 1, 1], [], []>} : vector<2x32xbf16>, vector<32x128xbf16>, vector<2x128xf32> -> vector<2x128xf32>
    %50 = arith.addf %46, %49 : vector<2x128xf32>
    %51 = vector.extract_strided_slice %50 {offsets = [0, 0], sizes = [2, 32], strides = [1, 1]} : vector<2x128xf32> to vector<2x32xf32>
    %52 = arith.negf %51 : vector<2x32xf32>
    %53 = math.exp %52 : vector<2x32xf32>
    %cst_19 = arith.constant 1.000000e+00 : f32
    %54 = vector.broadcast %cst_19 : f32 to vector<2x32xf32>
    %55 = arith.addf %54, %53 : vector<2x32xf32>
    %56 = arith.divf %54, %55 : vector<2x32xf32>
    %57 = vector.extract_strided_slice %50 {offsets = [0, 32], sizes = [2, 32], strides = [1, 1]} : vector<2x128xf32> to vector<2x32xf32>
    %58 = arith.negf %57 : vector<2x32xf32>
    %59 = math.exp %58 : vector<2x32xf32>
    %cst_20 = arith.constant 1.000000e+00 : f32
    %60 = vector.broadcast %cst_20 : f32 to vector<2x32xf32>
    %61 = arith.addf %60, %59 : vector<2x32xf32>
    %62 = arith.divf %60, %61 : vector<2x32xf32>
    %63 = vector.extract_strided_slice %50 {offsets = [0, 64], sizes = [2, 32], strides = [1, 1]} : vector<2x128xf32> to vector<2x32xf32>
    %64 = math.tanh %63 : vector<2x32xf32>
    %65 = vector.extract_strided_slice %50 {offsets = [0, 96], sizes = [2, 32], strides = [1, 1]} : vector<2x128xf32> to vector<2x32xf32>
    %66 = arith.negf %65 : vector<2x32xf32>
    %67 = math.exp %66 : vector<2x32xf32>
    %cst_21 = arith.constant 1.000000e+00 : f32
    %68 = vector.broadcast %cst_21 : f32 to vector<2x32xf32>
    %69 = arith.addf %68, %67 : vector<2x32xf32>
    %70 = arith.divf %68, %69 : vector<2x32xf32>
    %71 = arith.mulf %62, %35 : vector<2x32xf32>
    %72 = arith.mulf %56, %64 : vector<2x32xf32>
    %73 = arith.addf %71, %72 : vector<2x32xf32>
    %74 = math.tanh %73 : vector<2x32xf32>
    %75 = arith.mulf %70, %74 : vector<2x32xf32>
    %76 = arith.truncf %75 : vector<2x32xf32> to vector<2x32xbf16>
    %77 = arith.index_cast %c1_i32 : i32 to index
    %c0_22 = arith.constant 0 : index
    %c0_23 = arith.constant 0 : index
    %78 = vector.load %arg6[%77, %c0_22, %c0_23] : memref<8x2x32xbf16, #tpu.memory_space<vmem>>, vector<1x2x32xbf16>
    %79 = vector.shape_cast %78 : vector<1x2x32xbf16> to vector<2x32xbf16>
    %80 = vector.shape_cast %76 : vector<2x32xbf16> to vector<1x2x32xbf16>
    tpu.vector_store %arg6[%77, %c0_22, %c0_23], %80 {strides = array<i32>} : memref<8x2x32xbf16, #tpu.memory_space<vmem>>, vector<1x2x32xbf16>,
    %c2_i32 = arith.constant 2 : i32
    %81 = arith.index_cast %c2_i32 : i32 to index
    %c0_24 = arith.constant 0 : index
    %c0_25 = arith.constant 0 : index
    %82 = vector.load %arg2[%81, %c0_24, %c0_25] : memref<8x2x128xbf16, #tpu.memory_space<vmem>>, vector<1x2x128xbf16>
    %83 = vector.shape_cast %82 : vector<1x2x128xbf16> to vector<2x128xbf16>
    %84 = arith.extf %83 : vector<2x128xbf16> to vector<2x128xf32>
    %85 = arith.truncf %75 : vector<2x32xf32> to vector<2x32xbf16>
    %c0_26 = arith.constant 0 : index
    %c0_27 = arith.constant 0 : index
    %86 = vector.load %arg5[%c0_26, %c0_27] : memref<32x128xbf16, #tpu.memory_space<vmem>>, vector<32x128xbf16>
    %cst_28 = arith.constant dense<0.000000e+00> : vector<2x128xf32>
    %87 = tpu.matmul %85, %86, %cst_28 {dimension_numbers = #tpu.dot_dimension_numbers<[1], [0], [0], [1], [0, 0, 1, 1], [], []>} : vector<2x32xbf16>, vector<32x128xbf16>, vector<2x128xf32> -> vector<2x128xf32>
    %88 = arith.addf %84, %87 : vector<2x128xf32>
    %89 = vector.extract_strided_slice %88 {offsets = [0, 0], sizes = [2, 32], strides = [1, 1]} : vector<2x128xf32> to vector<2x32xf32>
    %90 = arith.negf %89 : vector<2x32xf32>
    %91 = math.exp %90 : vector<2x32xf32>
    %cst_29 = arith.constant 1.000000e+00 : f32
    %92 = vector.broadcast %cst_29 : f32 to vector<2x32xf32>
    %93 = arith.addf %92, %91 : vector<2x32xf32>
    %94 = arith.divf %92, %93 : vector<2x32xf32>
    %95 = vector.extract_strided_slice %88 {offsets = [0, 32], sizes = [2, 32], strides = [1, 1]} : vector<2x128xf32> to vector<2x32xf32>
    %96 = arith.negf %95 : vector<2x32xf32>
    %97 = math.exp %96 : vector<2x32xf32>
    %cst_30 = arith.constant 1.000000e+00 : f32
    %98 = vector.broadcast %cst_30 : f32 to vector<2x32xf32>
    %99 = arith.addf %98, %97 : vector<2x32xf32>
    %100 = arith.divf %98, %99 : vector<2x32xf32>
    %101 = vector.extract_strided_slice %88 {offsets = [0, 64], sizes = [2, 32], strides = [1, 1]} : vector<2x128xf32> to vector<2x32xf32>
    %102 = math.tanh %101 : vector<2x32xf32>
    %103 = vector.extract_strided_slice %88 {offsets = [0, 96], sizes = [2, 32], strides = [1, 1]} : vector<2x128xf32> to vector<2x32xf32>
    %104 = arith.negf %103 : vector<2x32xf32>
    %105 = math.exp %104 : vector<2x32xf32>
    %cst_31 = arith.constant 1.000000e+00 : f32
    %106 = vector.broadcast %cst_31 : f32 to vector<2x32xf32>
    %107 = arith.addf %106, %105 : vector<2x32xf32>
    %108 = arith.divf %106, %107 : vector<2x32xf32>
    %109 = arith.mulf %100, %73 : vector<2x32xf32>
    %110 = arith.mulf %94, %102 : vector<2x32xf32>
    %111 = arith.addf %109, %110 : vector<2x32xf32>
    %112 = math.tanh %111 : vector<2x32xf32>
    %113 = arith.mulf %108, %112 : vector<2x32xf32>
    %114 = arith.truncf %113 : vector<2x32xf32> to vector<2x32xbf16>
    %115 = arith.index_cast %c2_i32 : i32 to index
    %c0_32 = arith.constant 0 : index
    %c0_33 = arith.constant 0 : index
    %116 = vector.load %arg6[%115, %c0_32, %c0_33] : memref<8x2x32xbf16, #tpu.memory_space<vmem>>, vector<1x2x32xbf16>
    %117 = vector.shape_cast %116 : vector<1x2x32xbf16> to vector<2x32xbf16>
    %118 = vector.shape_cast %114 : vector<2x32xbf16> to vector<1x2x32xbf16>
    tpu.vector_store %arg6[%115, %c0_32, %c0_33], %118 {strides = array<i32>} : memref<8x2x32xbf16, #tpu.memory_space<vmem>>, vector<1x2x32xbf16>,
    %c3_i32 = arith.constant 3 : i32
    %119 = arith.index_cast %c3_i32 : i32 to index
    %c0_34 = arith.constant 0 : index
    %c0_35 = arith.constant 0 : index
    %120 = vector.load %arg2[%119, %c0_34, %c0_35] : memref<8x2x128xbf16, #tpu.memory_space<vmem>>, vector<1x2x128xbf16>
    %121 = vector.shape_cast %120 : vector<1x2x128xbf16> to vector<2x128xbf16>
    %122 = arith.extf %121 : vector<2x128xbf16> to vector<2x128xf32>
    %123 = arith.truncf %113 : vector<2x32xf32> to vector<2x32xbf16>
    %c0_36 = arith.constant 0 : index
    %c0_37 = arith.constant 0 : index
    %124 = vector.load %arg5[%c0_36, %c0_37] : memref<32x128xbf16, #tpu.memory_space<vmem>>, vector<32x128xbf16>
    %cst_38 = arith.constant dense<0.000000e+00> : vector<2x128xf32>
    %125 = tpu.matmul %123, %124, %cst_38 {dimension_numbers = #tpu.dot_dimension_numbers<[1], [0], [0], [1], [0, 0, 1, 1], [], []>} : vector<2x32xbf16>, vector<32x128xbf16>, vector<2x128xf32> -> vector<2x128xf32>
    %126 = arith.addf %122, %125 : vector<2x128xf32>
    %127 = vector.extract_strided_slice %126 {offsets = [0, 0], sizes = [2, 32], strides = [1, 1]} : vector<2x128xf32> to vector<2x32xf32>
    %128 = arith.negf %127 : vector<2x32xf32>
    %129 = math.exp %128 : vector<2x32xf32>
    %cst_39 = arith.constant 1.000000e+00 : f32
    %130 = vector.broadcast %cst_39 : f32 to vector<2x32xf32>
    %131 = arith.addf %130, %129 : vector<2x32xf32>
    %132 = arith.divf %130, %131 : vector<2x32xf32>
    %133 = vector.extract_strided_slice %126 {offsets = [0, 32], sizes = [2, 32], strides = [1, 1]} : vector<2x128xf32> to vector<2x32xf32>
    %134 = arith.negf %133 : vector<2x32xf32>
    %135 = math.exp %134 : vector<2x32xf32>
    %cst_40 = arith.constant 1.000000e+00 : f32
    %136 = vector.broadcast %cst_40 : f32 to vector<2x32xf32>
    %137 = arith.addf %136, %135 : vector<2x32xf32>
    %138 = arith.divf %136, %137 : vector<2x32xf32>
    %139 = vector.extract_strided_slice %126 {offsets = [0, 64], sizes = [2, 32], strides = [1, 1]} : vector<2x128xf32> to vector<2x32xf32>
    %140 = math.tanh %139 : vector<2x32xf32>
    %141 = vector.extract_strided_slice %126 {offsets = [0, 96], sizes = [2, 32], strides = [1, 1]} : vector<2x128xf32> to vector<2x32xf32>
    %142 = arith.negf %141 : vector<2x32xf32>
    %143 = math.exp %142 : vector<2x32xf32>
    %cst_41 = arith.constant 1.000000e+00 : f32
    %144 = vector.broadcast %cst_41 : f32 to vector<2x32xf32>
    %145 = arith.addf %144, %143 : vector<2x32xf32>
    %146 = arith.divf %144, %145 : vector<2x32xf32>
    %147 = arith.mulf %138, %111 : vector<2x32xf32>
    %148 = arith.mulf %132, %140 : vector<2x32xf32>
    %149 = arith.addf %147, %148 : vector<2x32xf32>
    %150 = math.tanh %149 : vector<2x32xf32>
    %151 = arith.mulf %146, %150 : vector<2x32xf32>
    %152 = arith.truncf %151 : vector<2x32xf32> to vector<2x32xbf16>
    %153 = arith.index_cast %c3_i32 : i32 to index
    %c0_42 = arith.constant 0 : index
    %c0_43 = arith.constant 0 : index
    %154 = vector.load %arg6[%153, %c0_42, %c0_43] : memref<8x2x32xbf16, #tpu.memory_space<vmem>>, vector<1x2x32xbf16>
    %155 = vector.shape_cast %154 : vector<1x2x32xbf16> to vector<2x32xbf16>
    %156 = vector.shape_cast %152 : vector<2x32xbf16> to vector<1x2x32xbf16>
    tpu.vector_store %arg6[%153, %c0_42, %c0_43], %156 {strides = array<i32>} : memref<8x2x32xbf16, #tpu.memory_space<vmem>>, vector<1x2x32xbf16>,
    %c4_i32 = arith.constant 4 : i32
    %157 = arith.index_cast %c4_i32 : i32 to index
    %c0_44 = arith.constant 0 : index
    %c0_45 = arith.constant 0 : index
    %158 = vector.load %arg2[%157, %c0_44, %c0_45] : memref<8x2x128xbf16, #tpu.memory_space<vmem>>, vector<1x2x128xbf16>
    %159 = vector.shape_cast %158 : vector<1x2x128xbf16> to vector<2x128xbf16>
    %160 = arith.extf %159 : vector<2x128xbf16> to vector<2x128xf32>
    %161 = arith.truncf %151 : vector<2x32xf32> to vector<2x32xbf16>
    %c0_46 = arith.constant 0 : index
    %c0_47 = arith.constant 0 : index
    %162 = vector.load %arg5[%c0_46, %c0_47] : memref<32x128xbf16, #tpu.memory_space<vmem>>, vector<32x128xbf16>
    %cst_48 = arith.constant dense<0.000000e+00> : vector<2x128xf32>
    %163 = tpu.matmul %161, %162, %cst_48 {dimension_numbers = #tpu.dot_dimension_numbers<[1], [0], [0], [1], [0, 0, 1, 1], [], []>} : vector<2x32xbf16>, vector<32x128xbf16>, vector<2x128xf32> -> vector<2x128xf32>
    %164 = arith.addf %160, %163 : vector<2x128xf32>
    %165 = vector.extract_strided_slice %164 {offsets = [0, 0], sizes = [2, 32], strides = [1, 1]} : vector<2x128xf32> to vector<2x32xf32>
    %166 = arith.negf %165 : vector<2x32xf32>
    %167 = math.exp %166 : vector<2x32xf32>
    %cst_49 = arith.constant 1.000000e+00 : f32
    %168 = vector.broadcast %cst_49 : f32 to vector<2x32xf32>
    %169 = arith.addf %168, %167 : vector<2x32xf32>
    %170 = arith.divf %168, %169 : vector<2x32xf32>
    %171 = vector.extract_strided_slice %164 {offsets = [0, 32], sizes = [2, 32], strides = [1, 1]} : vector<2x128xf32> to vector<2x32xf32>
    %172 = arith.negf %171 : vector<2x32xf32>
    %173 = math.exp %172 : vector<2x32xf32>
    %cst_50 = arith.constant 1.000000e+00 : f32
    %174 = vector.broadcast %cst_50 : f32 to vector<2x32xf32>
    %175 = arith.addf %174, %173 : vector<2x32xf32>
    %176 = arith.divf %174, %175 : vector<2x32xf32>
    %177 = vector.extract_strided_slice %164 {offsets = [0, 64], sizes = [2, 32], strides = [1, 1]} : vector<2x128xf32> to vector<2x32xf32>
    %178 = math.tanh %177 : vector<2x32xf32>
    %179 = vector.extract_strided_slice %164 {offsets = [0, 96], sizes = [2, 32], strides = [1, 1]} : vector<2x128xf32> to vector<2x32xf32>
    %180 = arith.negf %179 : vector<2x32xf32>
    %181 = math.exp %180 : vector<2x32xf32>
    %cst_51 = arith.constant 1.000000e+00 : f32
    %182 = vector.broadcast %cst_51 : f32 to vector<2x32xf32>
    %183 = arith.addf %182, %181 : vector<2x32xf32>
    %184 = arith.divf %182, %183 : vector<2x32xf32>
    %185 = arith.mulf %176, %149 : vector<2x32xf32>
    %186 = arith.mulf %170, %178 : vector<2x32xf32>
    %187 = arith.addf %185, %186 : vector<2x32xf32>
    %188 = math.tanh %187 : vector<2x32xf32>
    %189 = arith.mulf %184, %188 : vector<2x32xf32>
    %190 = arith.truncf %189 : vector<2x32xf32> to vector<2x32xbf16>
    %191 = arith.index_cast %c4_i32 : i32 to index
    %c0_52 = arith.constant 0 : index
    %c0_53 = arith.constant 0 : index
    %192 = vector.load %arg6[%191, %c0_52, %c0_53] : memref<8x2x32xbf16, #tpu.memory_space<vmem>>, vector<1x2x32xbf16>
    %193 = vector.shape_cast %192 : vector<1x2x32xbf16> to vector<2x32xbf16>
    %194 = vector.shape_cast %190 : vector<2x32xbf16> to vector<1x2x32xbf16>
    tpu.vector_store %arg6[%191, %c0_52, %c0_53], %194 {strides = array<i32>} : memref<8x2x32xbf16, #tpu.memory_space<vmem>>, vector<1x2x32xbf16>,
    %c5_i32 = arith.constant 5 : i32
    %195 = arith.index_cast %c5_i32 : i32 to index
    %c0_54 = arith.constant 0 : index
    %c0_55 = arith.constant 0 : index
    %196 = vector.load %arg2[%195, %c0_54, %c0_55] : memref<8x2x128xbf16, #tpu.memory_space<vmem>>, vector<1x2x128xbf16>
    %197 = vector.shape_cast %196 : vector<1x2x128xbf16> to vector<2x128xbf16>
    %198 = arith.extf %197 : vector<2x128xbf16> to vector<2x128xf32>
    %199 = arith.truncf %189 : vector<2x32xf32> to vector<2x32xbf16>
    %c0_56 = arith.constant 0 : index
    %c0_57 = arith.constant 0 : index
    %200 = vector.load %arg5[%c0_56, %c0_57] : memref<32x128xbf16, #tpu.memory_space<vmem>>, vector<32x128xbf16>
    %cst_58 = arith.constant dense<0.000000e+00> : vector<2x128xf32>
    %201 = tpu.matmul %199, %200, %cst_58 {dimension_numbers = #tpu.dot_dimension_numbers<[1], [0], [0], [1], [0, 0, 1, 1], [], []>} : vector<2x32xbf16>, vector<32x128xbf16>, vector<2x128xf32> -> vector<2x128xf32>
    %202 = arith.addf %198, %201 : vector<2x128xf32>
    %203 = vector.extract_strided_slice %202 {offsets = [0, 0], sizes = [2, 32], strides = [1, 1]} : vector<2x128xf32> to vector<2x32xf32>
    %204 = arith.negf %203 : vector<2x32xf32>
    %205 = math.exp %204 : vector<2x32xf32>
    %cst_59 = arith.constant 1.000000e+00 : f32
    %206 = vector.broadcast %cst_59 : f32 to vector<2x32xf32>
    %207 = arith.addf %206, %205 : vector<2x32xf32>
    %208 = arith.divf %206, %207 : vector<2x32xf32>
    %209 = vector.extract_strided_slice %202 {offsets = [0, 32], sizes = [2, 32], strides = [1, 1]} : vector<2x128xf32> to vector<2x32xf32>
    %210 = arith.negf %209 : vector<2x32xf32>
    %211 = math.exp %210 : vector<2x32xf32>
    %cst_60 = arith.constant 1.000000e+00 : f32
    %212 = vector.broadcast %cst_60 : f32 to vector<2x32xf32>
    %213 = arith.addf %212, %211 : vector<2x32xf32>
    %214 = arith.divf %212, %213 : vector<2x32xf32>
    %215 = vector.extract_strided_slice %202 {offsets = [0, 64], sizes = [2, 32], strides = [1, 1]} : vector<2x128xf32> to vector<2x32xf32>
    %216 = math.tanh %215 : vector<2x32xf32>
    %217 = vector.extract_strided_slice %202 {offsets = [0, 96], sizes = [2, 32], strides = [1, 1]} : vector<2x128xf32> to vector<2x32xf32>
    %218 = arith.negf %217 : vector<2x32xf32>
    %219 = math.exp %218 : vector<2x32xf32>
    %cst_61 = arith.constant 1.000000e+00 : f32
    %220 = vector.broadcast %cst_61 : f32 to vector<2x32xf32>
    %221 = arith.addf %220, %219 : vector<2x32xf32>
    %222 = arith.divf %220, %221 : vector<2x32xf32>
    %223 = arith.mulf %214, %187 : vector<2x32xf32>
    %224 = arith.mulf %208, %216 : vector<2x32xf32>
    %225 = arith.addf %223, %224 : vector<2x32xf32>
    %226 = math.tanh %225 : vector<2x32xf32>
    %227 = arith.mulf %222, %226 : vector<2x32xf32>
    %228 = arith.truncf %227 : vector<2x32xf32> to vector<2x32xbf16>
    %229 = arith.index_cast %c5_i32 : i32 to index
    %c0_62 = arith.constant 0 : index
    %c0_63 = arith.constant 0 : index
    %230 = vector.load %arg6[%229, %c0_62, %c0_63] : memref<8x2x32xbf16, #tpu.memory_space<vmem>>, vector<1x2x32xbf16>
    %231 = vector.shape_cast %230 : vector<1x2x32xbf16> to vector<2x32xbf16>
    %232 = vector.shape_cast %228 : vector<2x32xbf16> to vector<1x2x32xbf16>
    tpu.vector_store %arg6[%229, %c0_62, %c0_63], %232 {strides = array<i32>} : memref<8x2x32xbf16, #tpu.memory_space<vmem>>, vector<1x2x32xbf16>,
    %c6_i32 = arith.constant 6 : i32
    %233 = arith.index_cast %c6_i32 : i32 to index
    %c0_64 = arith.constant 0 : index
    %c0_65 = arith.constant 0 : index
    %234 = vector.load %arg2[%233, %c0_64, %c0_65] : memref<8x2x128xbf16, #tpu.memory_space<vmem>>, vector<1x2x128xbf16>
    %235 = vector.shape_cast %234 : vector<1x2x128xbf16> to vector<2x128xbf16>
    %236 = arith.extf %235 : vector<2x128xbf16> to vector<2x128xf32>
    %237 = arith.truncf %227 : vector<2x32xf32> to vector<2x32xbf16>
    %c0_66 = arith.constant 0 : index
    %c0_67 = arith.constant 0 : index
    %238 = vector.load %arg5[%c0_66, %c0_67] : memref<32x128xbf16, #tpu.memory_space<vmem>>, vector<32x128xbf16>
    %cst_68 = arith.constant dense<0.000000e+00> : vector<2x128xf32>
    %239 = tpu.matmul %237, %238, %cst_68 {dimension_numbers = #tpu.dot_dimension_numbers<[1], [0], [0], [1], [0, 0, 1, 1], [], []>} : vector<2x32xbf16>, vector<32x128xbf16>, vector<2x128xf32> -> vector<2x128xf32>
    %240 = arith.addf %236, %239 : vector<2x128xf32>
    %241 = vector.extract_strided_slice %240 {offsets = [0, 0], sizes = [2, 32], strides = [1, 1]} : vector<2x128xf32> to vector<2x32xf32>
    %242 = arith.negf %241 : vector<2x32xf32>
    %243 = math.exp %242 : vector<2x32xf32>
    %cst_69 = arith.constant 1.000000e+00 : f32
    %244 = vector.broadcast %cst_69 : f32 to vector<2x32xf32>
    %245 = arith.addf %244, %243 : vector<2x32xf32>
    %246 = arith.divf %244, %245 : vector<2x32xf32>
    %247 = vector.extract_strided_slice %240 {offsets = [0, 32], sizes = [2, 32], strides = [1, 1]} : vector<2x128xf32> to vector<2x32xf32>
    %248 = arith.negf %247 : vector<2x32xf32>
    %249 = math.exp %248 : vector<2x32xf32>
    %cst_70 = arith.constant 1.000000e+00 : f32
    %250 = vector.broadcast %cst_70 : f32 to vector<2x32xf32>
    %251 = arith.addf %250, %249 : vector<2x32xf32>
    %252 = arith.divf %250, %251 : vector<2x32xf32>
    %253 = vector.extract_strided_slice %240 {offsets = [0, 64], sizes = [2, 32], strides = [1, 1]} : vector<2x128xf32> to vector<2x32xf32>
    %254 = math.tanh %253 : vector<2x32xf32>
    %255 = vector.extract_strided_slice %240 {offsets = [0, 96], sizes = [2, 32], strides = [1, 1]} : vector<2x128xf32> to vector<2x32xf32>
    %256 = arith.negf %255 : vector<2x32xf32>
    %257 = math.exp %256 : vector<2x32xf32>
    %cst_71 = arith.constant 1.000000e+00 : f32
    %258 = vector.broadcast %cst_71 : f32 to vector<2x32xf32>
    %259 = arith.addf %258, %257 : vector<2x32xf32>
    %260 = arith.divf %258, %259 : vector<2x32xf32>
    %261 = arith.mulf %252, %225 : vector<2x32xf32>
    %262 = arith.mulf %246, %254 : vector<2x32xf32>
    %263 = arith.addf %261, %262 : vector<2x32xf32>
    %264 = math.tanh %263 : vector<2x32xf32>
    %265 = arith.mulf %260, %264 : vector<2x32xf32>
    %266 = arith.truncf %265 : vector<2x32xf32> to vector<2x32xbf16>
    %267 = arith.index_cast %c6_i32 : i32 to index
    %c0_72 = arith.constant 0 : index
    %c0_73 = arith.constant 0 : index
    %268 = vector.load %arg6[%267, %c0_72, %c0_73] : memref<8x2x32xbf16, #tpu.memory_space<vmem>>, vector<1x2x32xbf16>
    %269 = vector.shape_cast %268 : vector<1x2x32xbf16> to vector<2x32xbf16>
    %270 = vector.shape_cast %266 : vector<2x32xbf16> to vector<1x2x32xbf16>
    tpu.vector_store %arg6[%267, %c0_72, %c0_73], %270 {strides = array<i32>} : memref<8x2x32xbf16, #tpu.memory_space<vmem>>, vector<1x2x32xbf16>,
    %c7_i32 = arith.constant 7 : i32
    %271 = arith.index_cast %c7_i32 : i32 to index
    %c0_74 = arith.constant 0 : index
    %c0_75 = arith.constant 0 : index
    %272 = vector.load %arg2[%271, %c0_74, %c0_75] : memref<8x2x128xbf16, #tpu.memory_space<vmem>>, vector<1x2x128xbf16>
    %273 = vector.shape_cast %272 : vector<1x2x128xbf16> to vector<2x128xbf16>
    %274 = arith.extf %273 : vector<2x128xbf16> to vector<2x128xf32>
    %275 = arith.truncf %265 : vector<2x32xf32> to vector<2x32xbf16>
    %c0_76 = arith.constant 0 : index
    %c0_77 = arith.constant 0 : index
    %276 = vector.load %arg5[%c0_76, %c0_77] : memref<32x128xbf16, #tpu.memory_space<vmem>>, vector<32x128xbf16>
    %cst_78 = arith.constant dense<0.000000e+00> : vector<2x128xf32>
    %277 = tpu.matmul %275, %276, %cst_78 {dimension_numbers = #tpu.dot_dimension_numbers<[1], [0], [0], [1], [0, 0, 1, 1], [], []>} : vector<2x32xbf16>, vector<32x128xbf16>, vector<2x128xf32> -> vector<2x128xf32>
    %278 = arith.addf %274, %277 : vector<2x128xf32>
    %279 = vector.extract_strided_slice %278 {offsets = [0, 0], sizes = [2, 32], strides = [1, 1]} : vector<2x128xf32> to vector<2x32xf32>
    %280 = arith.negf %279 : vector<2x32xf32>
    %281 = math.exp %280 : vector<2x32xf32>
    %cst_79 = arith.constant 1.000000e+00 : f32
    %282 = vector.broadcast %cst_79 : f32 to vector<2x32xf32>
    %283 = arith.addf %282, %281 : vector<2x32xf32>
    %284 = arith.divf %282, %283 : vector<2x32xf32>
    %285 = vector.extract_strided_slice %278 {offsets = [0, 32], sizes = [2, 32], strides = [1, 1]} : vector<2x128xf32> to vector<2x32xf32>
    %286 = arith.negf %285 : vector<2x32xf32>
    %287 = math.exp %286 : vector<2x32xf32>
    %cst_80 = arith.constant 1.000000e+00 : f32
    %288 = vector.broadcast %cst_80 : f32 to vector<2x32xf32>
    %289 = arith.addf %288, %287 : vector<2x32xf32>
    %290 = arith.divf %288, %289 : vector<2x32xf32>
    %291 = vector.extract_strided_slice %278 {offsets = [0, 64], sizes = [2, 32], strides = [1, 1]} : vector<2x128xf32> to vector<2x32xf32>
    %292 = math.tanh %291 : vector<2x32xf32>
    %293 = vector.extract_strided_slice %278 {offsets = [0, 96], sizes = [2, 32], strides = [1, 1]} : vector<2x128xf32> to vector<2x32xf32>
    %294 = arith.negf %293 : vector<2x32xf32>
    %295 = math.exp %294 : vector<2x32xf32>
    %cst_81 = arith.constant 1.000000e+00 : f32
    %296 = vector.broadcast %cst_81 : f32 to vector<2x32xf32>
    %297 = arith.addf %296, %295 : vector<2x32xf32>
    %298 = arith.divf %296, %297 : vector<2x32xf32>
    %299 = arith.mulf %290, %263 : vector<2x32xf32>
    %300 = arith.mulf %284, %292 : vector<2x32xf32>
    %301 = arith.addf %299, %300 : vector<2x32xf32>
    %302 = math.tanh %301 : vector<2x32xf32>
    %303 = arith.mulf %298, %302 : vector<2x32xf32>
    %304 = arith.truncf %303 : vector<2x32xf32> to vector<2x32xbf16>
    %305 = arith.index_cast %c7_i32 : i32 to index
    %c0_82 = arith.constant 0 : index
    %c0_83 = arith.constant 0 : index
    %306 = vector.load %arg6[%305, %c0_82, %c0_83] : memref<8x2x32xbf16, #tpu.memory_space<vmem>>, vector<1x2x32xbf16>
    %307 = vector.shape_cast %306 : vector<1x2x32xbf16> to vector<2x32xbf16>
    %308 = vector.shape_cast %304 : vector<2x32xbf16> to vector<1x2x32xbf16>
    tpu.vector_store %arg6[%305, %c0_82, %c0_83], %308 {strides = array<i32>} : memref<8x2x32xbf16, #tpu.memory_space<vmem>>, vector<1x2x32xbf16>,
    %c8_i32 = arith.constant 8 : i32
    %c0_84 = arith.constant 0 : index
    %c0_85 = arith.constant 0 : index
    %309 = vector.load %arg9[%c0_84, %c0_85] : memref<2x32xf32, #tpu.memory_space<vmem>>, vector<2x32xf32>
    tpu.vector_store %arg9[%c0_84, %c0_85], %303 {strides = array<i32>} : memref<2x32xf32, #tpu.memory_space<vmem>>, vector<2x32xf32>,
    %c0_86 = arith.constant 0 : index
    %c0_87 = arith.constant 0 : index
    %310 = vector.load %arg10[%c0_86, %c0_87] : memref<2x32xf32, #tpu.memory_space<vmem>>, vector<2x32xf32>
    tpu.vector_store %arg10[%c0_86, %c0_87], %301 {strides = array<i32>} : memref<2x32xf32, #tpu.memory_space<vmem>>, vector<2x32xf32>,
    %c0_i32_88 = arith.constant 0 : i32
    %311 = arith.cmpi eq, %arg1, %c0_i32_88 : i32
    %312 = arith.extui %311 : i1 to i32
    %c0_i32_89 = arith.constant 0 : i32
    %313 = arith.cmpi ne, %312, %c0_i32_89 : i32
    scf.if %313 {
      %c0_90 = arith.constant 0 : index
      %c0_91 = arith.constant 0 : index
      %314 = vector.load %arg7[%c0_90, %c0_91] : memref<2x32xf32, #tpu.memory_space<vmem>>, vector<2x32xf32>
      tpu.vector_store %arg7[%c0_90, %c0_91], %303 {strides = array<i32>} : memref<2x32xf32, #tpu.memory_space<vmem>>, vector<2x32xf32>,
      %c0_92 = arith.constant 0 : index
      %c0_93 = arith.constant 0 : index
      %315 = vector.load %arg8[%c0_92, %c0_93] : memref<2x32xf32, #tpu.memory_space<vmem>>, vector<2x32xf32>
      tpu.vector_store %arg8[%c0_92, %c0_93], %301 {strides = array<i32>} : memref<2x32xf32, #tpu.memory_space<vmem>>, vector<2x32xf32>,
    } else {
    }
    return
  }
  func.func @transform_0(%arg0: i32, %arg1: i32) -> (i32, i32, i32) {
    %c0_i32 = arith.constant 0 : i32
    %c0_i32_0 = arith.constant 0 : i32
    return %arg1, %arg0, %c0_i32 : i32, i32, i32
  }
  func.func @transform_1(%arg0: i32, %arg1: i32) -> (i32, i32) {
    %c0_i32 = arith.constant 0 : i32
    %c0_i32_0 = arith.constant 0 : i32
    return %arg0, %c0_i32 : i32, i32
  }
  func.func @transform_2(%arg0: i32, %arg1: i32) -> (i32, i32) {
    %c0_i32 = arith.constant 0 : i32
    %c0_i32_0 = arith.constant 0 : i32
    return %arg0, %c0_i32 : i32, i32
  }
  func.func @transform_3(%arg0: i32, %arg1: i32) -> (i32, i32) {
    %c0_i32 = arith.constant 0 : i32
    %c0_i32_0 = arith.constant 0 : i32
    %c0_i32_1 = arith.constant 0 : i32
    return %c0_i32, %c0_i32_0 : i32, i32
  }
  func.func @transform_4(%arg0: i32, %arg1: i32) -> (i32, i32, i32) {
    %c0_i32 = arith.constant 0 : i32
    %c0_i32_0 = arith.constant 0 : i32
    return %arg1, %arg0, %c0_i32 : i32, i32, i32
  }
  func.func @transform_5(%arg0: i32, %arg1: i32) -> (i32, i32) {
    %c0_i32 = arith.constant 0 : i32
    %c0_i32_0 = arith.constant 0 : i32
    return %arg0, %c0_i32 : i32, i32
  }
  func.func @transform_6(%arg0: i32, %arg1: i32) -> (i32, i32) {
    %c0_i32 = arith.constant 0 : i32
    %c0_i32_0 = arith.constant 0 : i32
    return %arg0, %c0_i32 : i32, i32
  }
}

module attributes {stable_mosaic.version = 11 : i64} {
  func.func @_attention_kernel(%arg0: i32, %arg1: i32, %arg2: memref<1x8x32xbf16, #tpu.memory_space<vmem>>, %arg3: memref<1x8x32xbf16, #tpu.memory_space<vmem>>, %arg4: memref<32x32xbf16, #tpu.memory_space<vmem>>, %arg5: memref<32x32xbf16, #tpu.memory_space<vmem>>, %arg6: memref<32x32xbf16, #tpu.memory_space<vmem>>, %arg7: memref<1x32xf32, #tpu.memory_space<vmem>>, %arg8: memref<1x8x32xbf16, #tpu.memory_space<vmem>>) attributes {dimension_semantics = [#tpu.dimension_semantics<parallel>, #tpu.dimension_semantics<parallel>], iteration_bounds = array<i64: 2, 1>, scalar_prefetch = 0 : i64, scratch_operands = 0 : i64, tpu.core_type = #tpu.core_type<tc>, window_params = [{transform_indices = @transform_0, window_bounds = array<i64: 1, 8, 32>}, {transform_indices = @transform_1, window_bounds = array<i64: 1, 8, 32>}, {pipeline_mode = #tpu.pipeline_mode<synchronous>, transform_indices = @transform_2, window_bounds = array<i64: 32, 32>}, {pipeline_mode = #tpu.pipeline_mode<synchronous>, transform_indices = @transform_3, window_bounds = array<i64: 32, 32>}, {pipeline_mode = #tpu.pipeline_mode<synchronous>, transform_indices = @transform_4, window_bounds = array<i64: 32, 32>}, {pipeline_mode = #tpu.pipeline_mode<synchronous>, transform_indices = @transform_5, window_bounds = array<i64: 1, 32>}, {transform_indices = @transform_6, window_bounds = array<i64: 1, 8, 32>}]} {
    %c0 = arith.constant 0 : index
    %c0_0 = arith.constant 0 : index
    %c0_1 = arith.constant 0 : index
    %0 = vector.load %arg2[%c0, %c0_0, %c0_1] : memref<1x8x32xbf16, #tpu.memory_space<vmem>>, vector<1x8x32xbf16>
    %1 = vector.shape_cast %0 : vector<1x8x32xbf16> to vector<8x32xbf16>
    %c0_2 = arith.constant 0 : index
    %c0_3 = arith.constant 0 : index
    %c0_4 = arith.constant 0 : index
    %2 = vector.load %arg3[%c0_2, %c0_3, %c0_4] : memref<1x8x32xbf16, #tpu.memory_space<vmem>>, vector<1x8x32xbf16>
    %3 = vector.shape_cast %2 : vector<1x8x32xbf16> to vector<8x32xbf16>
    %c0_5 = arith.constant 0 : index
    %c0_6 = arith.constant 0 : index
    %4 = vector.load %arg4[%c0_5, %c0_6] : memref<32x32xbf16, #tpu.memory_space<vmem>>, vector<32x32xbf16>
    %cst = arith.constant dense<0.000000e+00> : vector<8x32xf32>
    %5 = tpu.matmul %1, %4, %cst {dimension_numbers = #tpu.dot_dimension_numbers<[1], [0], [0], [1], [0, 0, 1, 1], [], []>} : vector<8x32xbf16>, vector<32x32xbf16>, vector<8x32xf32> -> vector<8x32xf32>
    %6 = arith.truncf %5 : vector<8x32xf32> to vector<8x32xbf16>
    %cst_7 = arith.constant dense<0.000000e+00> : vector<8x8xf32>
    %7 = tpu.matmul %6, %3, %cst_7 {dimension_numbers = #tpu.dot_dimension_numbers<[1], [1], [0], [0], [0, 0, 1, 0], [], []>} : vector<8x32xbf16>, vector<8x32xbf16>, vector<8x8xf32> -> vector<8x8xf32>
    %cst_8 = arith.constant dense<0xFF800000> : vector<8xf32>
    %8 = vector.multi_reduction <maximumf>, %7, %cst_8 [1] : vector<8x8xf32> to vector<8xf32>
    %9 = vector.shape_cast %8 : vector<8xf32> to vector<8x1xf32>
    %10 = vector.broadcast %9 : vector<8x1xf32> to vector<8x8xf32>
    %11 = arith.subf %7, %10 : vector<8x8xf32>
    %12 = math.exp %11 : vector<8x8xf32>
    %cst_9 = arith.constant dense<0.000000e+00> : vector<8xf32>
    %13 = vector.multi_reduction <add>, %12, %cst_9 [1] : vector<8x8xf32> to vector<8xf32>
    %14 = vector.shape_cast %13 : vector<8xf32> to vector<8x1xf32>
    %15 = tpu.reciprocal %14 {approx = true} : vector<8x1xf32> -> vector<8x1xf32>
    %16 = vector.broadcast %15 : vector<8x1xf32> to vector<8x8xf32>
    %17 = arith.mulf %12, %16 : vector<8x8xf32>
    %18 = arith.truncf %17 : vector<8x8xf32> to vector<8x8xbf16>
    %cst_10 = arith.constant dense<0.000000e+00> : vector<8x32xf32>
    %19 = tpu.matmul %18, %3, %cst_10 {dimension_numbers = #tpu.dot_dimension_numbers<[1], [0], [0], [1], [0, 0, 1, 1], [], []>} : vector<8x8xbf16>, vector<8x32xbf16>, vector<8x32xf32> -> vector<8x32xf32>
    %20 = arith.truncf %19 : vector<8x32xf32> to vector<8x32xbf16>
    %c0_11 = arith.constant 0 : index
    %c0_12 = arith.constant 0 : index
    %21 = vector.load %arg5[%c0_11, %c0_12] : memref<32x32xbf16, #tpu.memory_space<vmem>>, vector<32x32xbf16>
    %cst_13 = arith.constant dense<0.000000e+00> : vector<8x32xf32>
    %22 = tpu.matmul %20, %21, %cst_13 {dimension_numbers = #tpu.dot_dimension_numbers<[1], [0], [0], [1], [0, 0, 1, 1], [], []>} : vector<8x32xbf16>, vector<32x32xbf16>, vector<8x32xf32> -> vector<8x32xf32>
    %c0_14 = arith.constant 0 : index
    %c0_15 = arith.constant 0 : index
    %23 = vector.load %arg6[%c0_14, %c0_15] : memref<32x32xbf16, #tpu.memory_space<vmem>>, vector<32x32xbf16>
    %cst_16 = arith.constant dense<0.000000e+00> : vector<8x32xf32>
    %24 = tpu.matmul %1, %23, %cst_16 {dimension_numbers = #tpu.dot_dimension_numbers<[1], [0], [0], [1], [0, 0, 1, 1], [], []>} : vector<8x32xbf16>, vector<32x32xbf16>, vector<8x32xf32> -> vector<8x32xf32>
    %25 = arith.addf %22, %24 : vector<8x32xf32>
    %c0_17 = arith.constant 0 : index
    %c0_18 = arith.constant 0 : index
    %26 = vector.load %arg7[%c0_17, %c0_18] : memref<1x32xf32, #tpu.memory_space<vmem>>, vector<1x32xf32>
    %27 = vector.broadcast %26 : vector<1x32xf32> to vector<8x32xf32>
    %28 = arith.addf %25, %27 : vector<8x32xf32>
    %29 = math.tanh %28 : vector<8x32xf32>
    %30 = arith.truncf %29 : vector<8x32xf32> to vector<8x32xbf16>
    %c0_19 = arith.constant 0 : index
    %c0_20 = arith.constant 0 : index
    %c0_21 = arith.constant 0 : index
    %31 = vector.load %arg8[%c0_19, %c0_20, %c0_21] : memref<1x8x32xbf16, #tpu.memory_space<vmem>>, vector<1x8x32xbf16>
    %32 = vector.shape_cast %31 : vector<1x8x32xbf16> to vector<8x32xbf16>
    %33 = vector.shape_cast %30 : vector<8x32xbf16> to vector<1x8x32xbf16>
    tpu.vector_store %arg8[%c0_19, %c0_20, %c0_21], %33 {strides = array<i32>} : memref<1x8x32xbf16, #tpu.memory_space<vmem>>, vector<1x8x32xbf16>,
    return
  }
  func.func @transform_0(%arg0: i32, %arg1: i32) -> (i32, i32, i32) {
    %c0_i32 = arith.constant 0 : i32
    %c0_i32_0 = arith.constant 0 : i32
    return %arg0, %arg1, %c0_i32 : i32, i32, i32
  }
  func.func @transform_1(%arg0: i32, %arg1: i32) -> (i32, i32, i32) {
    %c0_i32 = arith.constant 0 : i32
    %c0_i32_0 = arith.constant 0 : i32
    %c0_i32_1 = arith.constant 0 : i32
    return %arg0, %c0_i32, %c0_i32_0 : i32, i32, i32
  }
  func.func @transform_2(%arg0: i32, %arg1: i32) -> (i32, i32) {
    %c0_i32 = arith.constant 0 : i32
    %c0_i32_0 = arith.constant 0 : i32
    %c0_i32_1 = arith.constant 0 : i32
    return %c0_i32, %c0_i32_0 : i32, i32
  }
  func.func @transform_3(%arg0: i32, %arg1: i32) -> (i32, i32) {
    %c0_i32 = arith.constant 0 : i32
    %c0_i32_0 = arith.constant 0 : i32
    %c0_i32_1 = arith.constant 0 : i32
    return %c0_i32, %c0_i32_0 : i32, i32
  }
  func.func @transform_4(%arg0: i32, %arg1: i32) -> (i32, i32) {
    %c0_i32 = arith.constant 0 : i32
    %c0_i32_0 = arith.constant 0 : i32
    %c0_i32_1 = arith.constant 0 : i32
    return %c0_i32, %c0_i32_0 : i32, i32
  }
  func.func @transform_5(%arg0: i32, %arg1: i32) -> (i32, i32) {
    %c0_i32 = arith.constant 0 : i32
    %c0_i32_0 = arith.constant 0 : i32
    %c0_i32_1 = arith.constant 0 : i32
    return %c0_i32, %c0_i32_0 : i32, i32
  }
  func.func @transform_6(%arg0: i32, %arg1: i32) -> (i32, i32, i32) {
    %c0_i32 = arith.constant 0 : i32
    %c0_i32_0 = arith.constant 0 : i32
    return %arg0, %arg1, %c0_i32 : i32, i32, i32
  }
}

module attributes {stable_mosaic.version = 11 : i64} {
  func.func @_linear_kernel(%arg0: i32, %arg1: i32, %arg2: memref<16x32xbf16, #tpu.memory_space<vmem>>, %arg3: memref<32x16xbf16, #tpu.memory_space<vmem>>, %arg4: memref<1x16xf32, #tpu.memory_space<vmem>>, %arg5: memref<16x16xbf16, #tpu.memory_space<vmem>>) attributes {dimension_semantics = [#tpu.dimension_semantics<parallel>, #tpu.dimension_semantics<parallel>], iteration_bounds = array<i64: 1, 1>, scalar_prefetch = 0 : i64, scratch_operands = 0 : i64, tpu.core_type = #tpu.core_type<tc>, window_params = [{transform_indices = @transform_0, window_bounds = array<i64: 16, 32>}, {transform_indices = @transform_1, window_bounds = array<i64: 32, 16>}, {transform_indices = @transform_2, window_bounds = array<i64: 1, 16>}, {transform_indices = @transform_3, window_bounds = array<i64: 16, 16>}]} {
    %c0 = arith.constant 0 : index
    %c0_0 = arith.constant 0 : index
    %0 = vector.load %arg2[%c0, %c0_0] : memref<16x32xbf16, #tpu.memory_space<vmem>>, vector<16x32xbf16>
    %c0_1 = arith.constant 0 : index
    %c0_2 = arith.constant 0 : index
    %1 = vector.load %arg3[%c0_1, %c0_2] : memref<32x16xbf16, #tpu.memory_space<vmem>>, vector<32x16xbf16>
    %cst = arith.constant dense<0.000000e+00> : vector<16x16xf32>
    %2 = tpu.matmul %0, %1, %cst {dimension_numbers = #tpu.dot_dimension_numbers<[1], [0], [0], [1], [0, 0, 1, 1], [], []>} : vector<16x32xbf16>, vector<32x16xbf16>, vector<16x16xf32> -> vector<16x16xf32>
    %c0_3 = arith.constant 0 : index
    %c0_4 = arith.constant 0 : index
    %3 = vector.load %arg4[%c0_3, %c0_4] : memref<1x16xf32, #tpu.memory_space<vmem>>, vector<1x16xf32>
    %4 = vector.broadcast %3 : vector<1x16xf32> to vector<16x16xf32>
    %5 = arith.addf %2, %4 : vector<16x16xf32>
    %6 = arith.truncf %5 : vector<16x16xf32> to vector<16x16xbf16>
    %c0_5 = arith.constant 0 : index
    %c0_6 = arith.constant 0 : index
    %7 = vector.load %arg5[%c0_5, %c0_6] : memref<16x16xbf16, #tpu.memory_space<vmem>>, vector<16x16xbf16>
    tpu.vector_store %arg5[%c0_5, %c0_6], %6 {strides = array<i32>} : memref<16x16xbf16, #tpu.memory_space<vmem>>, vector<16x16xbf16>,
    return
  }
  func.func @transform_0(%arg0: i32, %arg1: i32) -> (i32, i32) {
    %c0_i32 = arith.constant 0 : i32
    %c0_i32_0 = arith.constant 0 : i32
    return %arg1, %c0_i32 : i32, i32
  }
  func.func @transform_1(%arg0: i32, %arg1: i32) -> (i32, i32) {
    %c0_i32 = arith.constant 0 : i32
    %c0_i32_0 = arith.constant 0 : i32
    return %c0_i32, %arg0 : i32, i32
  }
  func.func @transform_2(%arg0: i32, %arg1: i32) -> (i32, i32) {
    %c0_i32 = arith.constant 0 : i32
    %c0_i32_0 = arith.constant 0 : i32
    return %c0_i32, %arg0 : i32, i32
  }
  func.func @transform_3(%arg0: i32, %arg1: i32) -> (i32, i32) {
    %c0_i32 = arith.constant 0 : i32
    return %arg1, %arg0 : i32, i32
  }
}

</mosaic_0001>

<llo_original>
// kernel: lstm_decoder_forward.7
$region0: #{lstm_decoder_forward.7}
  #allocation0 [shape = 'u32[]', space=smem, size = 0x4, offset = 0x4, fixed_abs, tag = 'smem constant byte address 0x4 - core index']
  #allocation1 [shape = 'u32[144,128]{1,0:T(1,128)}', space=vmem, size = 0x12000, scoped, tag = 'internal scratch']
  %s0 = inlined_call_operand.vmem [shape: bf16[16,32], index: 0, kind: input, shape index: {}]
  %s1 = inlined_call_operand.vmem [shape: bf16[32,16], index: 1, kind: input, shape index: {}]
  %s2 = inlined_call_operand.vmem [shape: f32[1,16], index: 2, kind: input, shape index: {}]
  %s3 = inlined_call_operand.hbm [shape: bf16[16,16], index: 3, kind: output, shape index: {}]
  %s4 = sld [smem:[#allocation0]]
  $region22: #{lstm_decoder_forward.7} parent=0
    _
  %s6 = ssub.s32 1, %s4
  %s7 = scalar_select 0, %s6, %s4
  $region1: #{lstm_decoder_forward.7} parent=0
    #allocation2 [shape = 'u8[4096]{0}', space=vmem, size = 0x1000, scoped, tag = 'output window, operand 0, single buffered']
    #allocation3 [shape = 's32[1]{0}', space=sflag, size = 0x4, scoped, tag = 'scoped memory for lstm_decoder_forward.7']
    %8 = vsyncpa [#allocation3], 0
    // Predicated region
    $region2: #{lstm_decoder_forward.7} parent=1 // pred_check
      _
    $region3: #{lstm_decoder_forward.7} parent=1 // pred_check_branch
      %10 = sbr.rel (0) target = $region5
    $region4: #{lstm_decoder_forward.7} parent=1 // pred_region
      _
    $region5: #{lstm_decoder_forward.7} parent=1 // pred_fallthru
      _
    // Predicated region
    $region6: #{lstm_decoder_forward.7} parent=1 // pred_check
      _
    $region7: #{lstm_decoder_forward.7} parent=1 // pred_check_branch
      %12 = sbr.rel (0) target = $region9
    $region8: #{lstm_decoder_forward.7} parent=1 // pred_region
      _
    $region9: #{lstm_decoder_forward.7} parent=1 // pred_fallthru
      _
    // Predicated region
    $region10: #{lstm_decoder_forward.7} parent=1 // pred_check
      _
    $region11: #{lstm_decoder_forward.7} parent=1 // pred_check_branch
      %14 = sbr.rel (0) target = $region13
    $region12: #{lstm_decoder_forward.7} parent=1 // pred_region
      _
    $region13: #{lstm_decoder_forward.7} parent=1 // pred_fallthru
      _
    %v16 = vld [vmem:[%s0] sm:$0xf]
    %v17 = vld [vmem:[%s0 + $0x4] sm:$0xf]
    %v18 = vld [vmem:[%s1] sm:$0xf]
    %v19 = vld [vmem:[%s1 + $0x4] sm:$0xf]
    %v20 = vld [vmem:[%s1 + $0x8] sm:$0xf]
    %v21 = vld [vmem:[%s1 + $0xc] sm:$0xf]
    %v22 = vld [vmem:[%s2] sm:$0x1]
    %v24 = vlaneseq
    %v25 = vshrl.u32 %v24, 7
    %v26 = vsub.s32 0, %v25
    %v27 = vrot.slane %v22, %v26
    %v31 = vunpack.c.l.b16 %v16
    %v32 = vunpack.c.l.b16 %v17
    %v33 = vpack.c.b16 %v32, %v31
    %v38 = vunpack.c.l.b16 %v18
    %v39 = vunpack.c.l.b16 %v19
    %v40 = vunpack.c.l.b16 %v20
    %v41 = vunpack.c.l.b16 %v21
    %v42 = vpack.c.b16 %v39, %v38
    %v43 = vpack.c.b16 %v41, %v40
    %vm46 = vcmask 261120
    %v48 = vsel %vm46, %v33, 0
    %50 = vmatprep.subr.bf16.mxu0 0
    %51 = vmatpush1.bf16.msra.mxu0 %v42
    %52 = vmatprep.subr.bf16.mxu0 0
    %53 = vmatpush1.bf16.msra.mxu0 %v43
    %54 = vmatprep.subr.bf16.mxu0 0
    %55 = vmatpush1.bf16.msra.mxu0 0
    %56 = vmatprep.subr.bf16.mxu0 0
    %57 = vmatpush1.bf16.msra.mxu0 0
    %58 = vmatprep.subr.bf16.mxu0 0
    %59 = vmatpush1.bf16.msra.mxu0 0
    %60 = vmatprep.subr.bf16.mxu0 0
    %61 = vmatpush1.bf16.msra.mxu0 0
    %62 = vmatprep.subr.bf16.mxu0 0
    %63 = vmatpush1.bf16.msra.mxu0 0
    %64 = vmatprep.subr.bf16.mxu0 0
    %65 = vmatpush1.bf16.msra.mxu0 0
    %66 = vmatprep.subr.bf16.mxu0 0
    %67 = vmatpush1.bf16.msra.mxu0 0
    %68 = vmatprep.subr.bf16.mxu0 0
    %69 = vmatpush1.bf16.msra.mxu0 0
    %70 = vmatprep.subr.bf16.mxu0 0
    %71 = vmatpush1.bf16.msra.mxu0 0
    %72 = vmatprep.subr.bf16.mxu0 0
    %73 = vmatpush1.bf16.msra.mxu0 0
    %74 = vmatprep.subr.bf16.mxu0 0
    %75 = vmatpush1.bf16.msra.mxu0 0
    %76 = vmatprep.subr.bf16.mxu0 0
    %77 = vmatpush1.bf16.msra.mxu0 0
    %78 = vmatprep.subr.bf16.mxu0 0
    %79 = vmatpush1.bf16.msra.mxu0 0
    %80 = vmatprep.subr.bf16.mxu0 0
    %81 = vmatpush1.bf16.msra.mxu0 0
    %82 = vmatprep.mubr.bf16.mxu0 0
    %83 = vmatmul.mubr.bf16.gmra.mrb[0].mxu0 %v48
    %v84 = vpop.f32.mrb[0].mxu0
    %v85 = vadd.f32 %v27, %v84
    %v86 = vpop.f32.mrb[0].mxu0
    %v87 = vpop.f32.mrb[0].mxu0
    %v88 = vadd.f32 %v27, %v87
    %v89 = vpop.f32.mrb[0].mxu0
    %90 = vdwg.mxu0
    %v91 = vpack.c.bf16 %v88, %v85
    %v93 = vunpack.c.l.b16 %v91
    %v94 = vunpack.c.h.b16 %v91
    %v95 = vpack.c.b16 %v93, %v93
    %v96 = vpack.c.b16 %v94, %v94
    %vm99 = vcmask 125952
    %100 = vst.msk [vmem:[#allocation2] sm:$0xf] %vm99, %v95
    %101 = vst.msk [vmem:[#allocation2 + $0x4] sm:$0xf] %vm99, %v96
    // Predicated region
    $region14: #{lstm_decoder_forward.7} parent=1 // pred_check
      _
    $region15: #{lstm_decoder_forward.7} parent=1 // pred_check_branch
      %103 = sbr.rel (0) target = $region17
    $region16: #{lstm_decoder_forward.7} parent=1 // pred_region
      %s105 = ssub.s32 128, 128
      %106 = vsyncadd [#allocation3], %s105
      %s107 = sshll.u32 [#allocation2], 4
      %s108 = int_to_ptr.vmem [resolvable:$true] %s107
      %113 = dma.vmem_to_hbm [thread:$0]  %s108, 128, %s3, [#allocation3], 64, 64, 4
    $region17: #{lstm_decoder_forward.7} parent=1 // pred_fallthru
      _
    // Predicated region
    $region18: #{lstm_decoder_forward.7} parent=1 // pred_check
      _
    $region19: #{lstm_decoder_forward.7} parent=1 // pred_check_branch
      %115 = sbr.rel (0) target = $region21
    $region20: #{lstm_decoder_forward.7} parent=1 // pred_region
      %116 = dma.done [#allocation3], 128
    $region21: #{lstm_decoder_forward.7} parent=1 // pred_fallthru
      _
    %117 = vsyncpa [#allocation3], 1

// kernel: lstm_decoder_forward.4
$region0: #{lstm_decoder_forward.4}
  #allocation0 [shape = 'u32[]', space=smem, size = 0x4, offset = 0x4, fixed_abs, tag = 'smem constant byte address 0x4 - core index']
  #allocation1 [shape = 'u32[144,128]{1,0:T(1,128)}', space=vmem, size = 0x12000, scoped, tag = 'internal scratch']
  %s0 = inlined_call_operand.vmem [shape: bf16[16,32], index: 0, kind: input, shape index: {}]
  %s1 = inlined_call_operand.vmem [shape: bf16[32,128], index: 1, kind: input, shape index: {}]
  %s2 = inlined_call_operand.vmem [shape: f32[1,128], index: 2, kind: input, shape index: {}]
  %s3 = inlined_call_operand.vmem [shape: bf16[16,128], index: 3, kind: output, shape index: {}]
  %s4 = sld [smem:[#allocation0]]
  $region22: #{lstm_decoder_forward.4} parent=0
    _
  %s6 = ssub.s32 1, %s4
  %s7 = scalar_select 0, %s6, %s4
  // Predicated region
  $region2: #{lstm_decoder_forward.4} parent=0 // pred_check
    _
  $region3: #{lstm_decoder_forward.4} parent=0 // pred_check_branch
    %9 = sbr.rel (0) target = $region5
  $region4: #{lstm_decoder_forward.4} parent=0 // pred_region
    _
  $region5: #{lstm_decoder_forward.4} parent=0 // pred_fallthru
    _
  // Predicated region
  $region6: #{lstm_decoder_forward.4} parent=0 // pred_check
    _
  $region7: #{lstm_decoder_forward.4} parent=0 // pred_check_branch
    %11 = sbr.rel (0) target = $region9
  $region8: #{lstm_decoder_forward.4} parent=0 // pred_region
    _
  $region9: #{lstm_decoder_forward.4} parent=0 // pred_fallthru
    _
  // Predicated region
  $region10: #{lstm_decoder_forward.4} parent=0 // pred_check
    _
  $region11: #{lstm_decoder_forward.4} parent=0 // pred_check_branch
    %13 = sbr.rel (0) target = $region13
  $region12: #{lstm_decoder_forward.4} parent=0 // pred_region
    _
  $region13: #{lstm_decoder_forward.4} parent=0 // pred_fallthru
    _
  %v15 = vld [vmem:[%s0] sm:$0xf]
  %v16 = vld [vmem:[%s0 + $0x4] sm:$0xf]
  %v17 = vld [vmem:[%s1] sm:$0xf]
  %v18 = vld [vmem:[%s1 + $0x4] sm:$0xf]
  %v19 = vld [vmem:[%s1 + $0x8] sm:$0xf]
  %v20 = vld [vmem:[%s1 + $0xc] sm:$0xf]
  %v21 = vld [vmem:[%s2] sm:$0x1]
  %v23 = vlaneseq
  %v24 = vshrl.u32 %v23, 7
  %v25 = vsub.s32 0, %v24
  %v26 = vrot.slane %v21, %v25
  %v30 = vunpack.c.l.b16 %v15
  %v31 = vunpack.c.l.b16 %v16
  %v32 = vpack.c.b16 %v31, %v30
  %v37 = vunpack.c.l.b16 %v17
  %v38 = vunpack.c.l.b16 %v18
  %v39 = vunpack.c.l.b16 %v19
  %v40 = vunpack.c.l.b16 %v20
  %v41 = vpack.c.b16 %v38, %v37
  %v42 = vpack.c.b16 %v40, %v39
  %vm45 = vcmask 261120
  %v47 = vsel %vm45, %v32, 0
  %49 = vmatprep.subr.bf16.mxu0 0
  %50 = vmatpush1.bf16.msra.mxu0 %v41
  %51 = vmatprep.subr.bf16.mxu0 0
  %52 = vmatpush1.bf16.msra.mxu0 %v42
  %53 = vmatprep.subr.bf16.mxu0 0
  %54 = vmatpush1.bf16.msra.mxu0 0
  %55 = vmatprep.subr.bf16.mxu0 0
  %56 = vmatpush1.bf16.msra.mxu0 0
  %57 = vmatprep.subr.bf16.mxu0 0
  %58 = vmatpush1.bf16.msra.mxu0 0
  %59 = vmatprep.subr.bf16.mxu0 0
  %60 = vmatpush1.bf16.msra.mxu0 0
  %61 = vmatprep.subr.bf16.mxu0 0
  %62 = vmatpush1.bf16.msra.mxu0 0
  %63 = vmatprep.subr.bf16.mxu0 0
  %64 = vmatpush1.bf16.msra.mxu0 0
  %65 = vmatprep.subr.bf16.mxu0 0
  %66 = vmatpush1.bf16.msra.mxu0 0
  %67 = vmatprep.subr.bf16.mxu0 0
  %68 = vmatpush1.bf16.msra.mxu0 0
  %69 = vmatprep.subr.bf16.mxu0 0
  %70 = vmatpush1.bf16.msra.mxu0 0
  %71 = vmatprep.subr.bf16.mxu0 0
  %72 = vmatpush1.bf16.msra.mxu0 0
  %73 = vmatprep.subr.bf16.mxu0 0
  %74 = vmatpush1.bf16.msra.mxu0 0
  %75 = vmatprep.subr.bf16.mxu0 0
  %76 = vmatpush1.bf16.msra.mxu0 0
  %77 = vmatprep.subr.bf16.mxu0 0
  %78 = vmatpush1.bf16.msra.mxu0 0
  %79 = vmatprep.subr.bf16.mxu0 0
  %80 = vmatpush1.bf16.msra.mxu0 0
  %81 = vmatprep.mubr.bf16.mxu0 0
  %82 = vmatmul.mubr.bf16.gmra.mrb[0].mxu0 %v47
  %v83 = vpop.f32.mrb[0].mxu0
  %v84 = vadd.f32 %v26, %v83
  %v85 = vpop.f32.mrb[0].mxu0
  %v86 = vpop.f32.mrb[0].mxu0
  %v87 = vadd.f32 %v26, %v86
  %v88 = vpop.f32.mrb[0].mxu0
  %89 = vdwg.mxu0
  %v90 = vpack.c.bf16 %v87, %v84
  %v92 = vunpack.c.l.b16 %v90
  %v93 = vunpack.c.h.b16 %v90
  %v94 = vpack.c.b16 %v92, %v92
  %v95 = vpack.c.b16 %v93, %v93
  %98 = vst [vmem:[%s3] sm:$0xf] %v94
  %99 = vst [vmem:[%s3 + $0x4] sm:$0xf] %v95
  // Predicated region
  $region14: #{lstm_decoder_forward.4} parent=0 // pred_check
    _
  $region15: #{lstm_decoder_forward.4} parent=0 // pred_check_branch
    %101 = sbr.rel (0) target = $region17
  $region16: #{lstm_decoder_forward.4} parent=0 // pred_region
    _
  $region17: #{lstm_decoder_forward.4} parent=0 // pred_fallthru
    _
  // Predicated region
  $region18: #{lstm_decoder_forward.4} parent=0 // pred_check
    _
  $region19: #{lstm_decoder_forward.4} parent=0 // pred_check_branch
    %103 = sbr.rel (0) target = $region21
  $region20: #{lstm_decoder_forward.4} parent=0 // pred_region
    _
  $region21: #{lstm_decoder_forward.4} parent=0 // pred_fallthru
    _

// kernel: lstm_decoder_forward.6
$region0: #{lstm_decoder_forward.6}
  #allocation0 [shape = 'u32[]', space=smem, size = 0x4, offset = 0x4, fixed_abs, tag = 'smem constant byte address 0x4 - core index']
  #allocation1 [shape = 'u32[144,128]{1,0:T(1,128)}', space=vmem, size = 0x12000, scoped, tag = 'internal scratch']
  %s0 = inlined_call_operand.vmem [shape: bf16[2,8,32], index: 0, kind: input, shape index: {}]
  %s1 = inlined_call_operand.vmem [shape: bf16[2,8,32], index: 1, kind: input, shape index: {}]
  %s2 = inlined_call_operand.vmem [shape: bf16[32,32], index: 2, kind: input, shape index: {}]
  %s3 = inlined_call_operand.vmem [shape: bf16[32,32], index: 3, kind: input, shape index: {}]
  %s4 = inlined_call_operand.vmem [shape: bf16[32,32], index: 4, kind: input, shape index: {}]
  %s5 = inlined_call_operand.vmem [shape: f32[1,32], index: 5, kind: input, shape index: {}]
  %s6 = inlined_call_operand.vmem [shape: bf16[2,8,32], index: 6, kind: output, shape index: {}]
  %s7 = sld [smem:[#allocation0]]
  $region57: #{lstm_decoder_forward.6} parent=0
    _
  %s9 = ssub.s32 1, %s7
  %s10 = scalar_select 0, %s9, %s7
  loop: start=0, step=1, limit=4
  $region2: #{lstm_decoder_forward.6} parent=0 // loop_pre_header
    _
  $region3: #{lstm_decoder_forward.6} parent=0 // loop_header
    %s12 = sphi 0, %s16
    %p13 = scmp.ge.s32.totalorder %s12, 4
    %s19 = sphi 0, %s31
    %s20 = sphi 0, %s27
    %s21 = sphi 0, %s19
    %s22 = sphi 0, %s20
    %s23 = sphi 0, %s21
    %s24 = sphi 0, %s22
    %s36 = sphi 0, %s38
    %s39 = sphi 0, %s36
    %s40 = sphi 0, %s39
    %s56 = sphi 0, %s40
    %s62 = sphi 0, %s64
    %s65 = sphi 0, %s62
    %s66 = sphi 0, %s65
    %s82 = sphi 0, %s66
    %s86 = sphi 0, %s86
    %s88 = sphi 0, %s86
    %s89 = sphi 0, %s88
    %s103 = sphi 0, %s89
    %s107 = sphi 0, %s107
    %s109 = sphi 0, %s107
    %s110 = sphi 0, %s109
    %s124 = sphi 0, %s110
    %s128 = sphi 0, %s128
    %s130 = sphi 0, %s128
    %s131 = sphi 0, %s130
    %s145 = sphi 0, %s131
    %s149 = sphi 0, %s149
    %s151 = sphi 0, %s149
    %s152 = sphi 0, %s151
    %s166 = sphi 0, %s152
    %s174 = sphi 0, %s176
    %s177 = sphi 0, %s174
    %s178 = sphi 0, %s177
    %s194 = sphi 0, %s178
  $region4: #{lstm_decoder_forward.6} parent=0 // loop_header_branch
    %15 = sbr.rel (%p13) target = $region8
  $region5: #{lstm_decoder_forward.6} parent=0 // loop_body
    %s17 = ssub.s32 %s12, 1
    %s18 = ssub.s32 %s12, 2
    %s25 = sadd.s32 1, %s20
    %p26 = scmp.ge.s32.totalorder %s25, 1
    %s27 = scalar_select %p26, 0, %s25
    %s28 = sadd.s32 1, %s19
    %s29 = scalar_select %p26, %s28, %s19
    %p30 = scmp.ge.s32.totalorder %s29, 2
    %s31 = scalar_select %p30, 0, %s29
    %s32 = ssub.s32 %s19, %s31
    %s33 = ssub.s32 %s20, %s27
    %s34 = sor.u32 %s32, %s33
    %p35 = scmp.eq.s32.totalorder %s34, 0
    %s37 = sadd.s32 %s36, 1
    %s38 = scalar_select %p35, %s36, %s37
    %p41 = pneg %p35
    %p42 = scmp.eq.s32.totalorder %s12, 1
    %p43 = por %p41, %p42
    %p44 = scmp.ne.s32.totalorder %s36, %s39
    %p45 = scmp.eq.s32.totalorder %s12, 0
    %p46 = por %p44, %p45
    %p47 = scmp.ne.s32.totalorder %s36, %s39
    %p48 = scmp.eq.s32.totalorder %s17, 1
    %p49 = por %p47, %p48
    %p50 = scmp.ne.s32.totalorder %s39, %s40
    %p51 = scmp.eq.s32.totalorder %s17, 0
    %p52 = por %p50, %p51
    %p53 = scmp.ne.s32.totalorder %s39, %s40
    %p54 = scmp.eq.s32.totalorder %s18, 1
    %p55 = por %p53, %p54
    %p57 = scmp.ne.s32.totalorder %s40, %s56
    %p58 = scmp.eq.s32.totalorder %s18, 0
    %p59 = por %p57, %p58
    %s60 = ssub.s32 %s19, %s31
    %p61 = scmp.eq.s32.totalorder %s60, 0
    %s63 = sadd.s32 %s62, 1
    %s64 = scalar_select %p61, %s62, %s63
    %p67 = pneg %p61
    %p68 = scmp.eq.s32.totalorder %s12, 1
    %p69 = por %p67, %p68
    %p70 = scmp.ne.s32.totalorder %s62, %s65
    %p71 = scmp.eq.s32.totalorder %s12, 0
    %p72 = por %p70, %p71
    %p73 = scmp.ne.s32.totalorder %s62, %s65
    %p74 = scmp.eq.s32.totalorder %s17, 1
    %p75 = por %p73, %p74
    %p76 = scmp.ne.s32.totalorder %s65, %s66
    %p77 = scmp.eq.s32.totalorder %s17, 0
    %p78 = por %p76, %p77
    %p79 = scmp.ne.s32.totalorder %s65, %s66
    %p80 = scmp.eq.s32.totalorder %s18, 1
    %p81 = por %p79, %p80
    %p83 = scmp.ne.s32.totalorder %s66, %s82
    %p84 = scmp.eq.s32.totalorder %s18, 0
    %p85 = por %p83, %p84
    %s87 = sadd.s32 %s86, 1
    %p90 = scmp.eq.s32.totalorder %s12, 1
    %p91 = scmp.ne.s32.totalorder %s86, %s88
    %p92 = scmp.eq.s32.totalorder %s12, 0
    %p93 = por %p91, %p92
    %p94 = scmp.ne.s32.totalorder %s86, %s88
    %p95 = scmp.eq.s32.totalorder %s17, 1
    %p96 = por %p94, %p95
    %p97 = scmp.ne.s32.totalorder %s88, %s89
    %p98 = scmp.eq.s32.totalorder %s17, 0
    %p99 = por %p97, %p98
    %p100 = scmp.ne.s32.totalorder %s88, %s89
    %p101 = scmp.eq.s32.totalorder %s18, 1
    %p102 = por %p100, %p101
    %p104 = scmp.ne.s32.totalorder %s89, %s103
    %p105 = scmp.eq.s32.totalorder %s18, 0
    %p106 = por %p104, %p105
    %s108 = sadd.s32 %s107, 1
    %p111 = scmp.eq.s32.totalorder %s12, 1
    %p112 = scmp.ne.s32.totalorder %s107, %s109
    %p113 = scmp.eq.s32.totalorder %s12, 0
    %p114 = por %p112, %p113
    %p115 = scmp.ne.s32.totalorder %s107, %s109
    %p116 = scmp.eq.s32.totalorder %s17, 1
    %p117 = por %p115, %p116
    %p118 = scmp.ne.s32.totalorder %s109, %s110
    %p119 = scmp.eq.s32.totalorder %s17, 0
    %p120 = por %p118, %p119
    %p121 = scmp.ne.s32.totalorder %s109, %s110
    %p122 = scmp.eq.s32.totalorder %s18, 1
    %p123 = por %p121, %p122
    %p125 = scmp.ne.s32.totalorder %s110, %s124
    %p126 = scmp.eq.s32.totalorder %s18, 0
    %p127 = por %p125, %p126
    %s129 = sadd.s32 %s128, 1
    %p132 = scmp.eq.s32.totalorder %s12, 1
    %p133 = scmp.ne.s32.totalorder %s128, %s130
    %p134 = scmp.eq.s32.totalorder %s12, 0
    %p135 = por %p133, %p134
    %p136 = scmp.ne.s32.totalorder %s128, %s130
    %p137 = scmp.eq.s32.totalorder %s17, 1
    %p138 = por %p136, %p137
    %p139 = scmp.ne.s32.totalorder %s130, %s131
    %p140 = scmp.eq.s32.totalorder %s17, 0
    %p141 = por %p139, %p140
    %p142 = scmp.ne.s32.totalorder %s130, %s131
    %p143 = scmp.eq.s32.totalorder %s18, 1
    %p144 = por %p142, %p143
    %p146 = scmp.ne.s32.totalorder %s131, %s145
    %p147 = scmp.eq.s32.totalorder %s18, 0
    %p148 = por %p146, %p147
    %s150 = sadd.s32 %s149, 1
    %p153 = scmp.eq.s32.totalorder %s12, 1
    %p154 = scmp.ne.s32.totalorder %s149, %s151
    %p155 = scmp.eq.s32.totalorder %s12, 0
    %p156 = por %p154, %p155
    %p157 = scmp.ne.s32.totalorder %s149, %s151
    %p158 = scmp.eq.s32.totalorder %s17, 1
    %p159 = por %p157, %p158
    %p160 = scmp.ne.s32.totalorder %s151, %s152
    %p161 = scmp.eq.s32.totalorder %s17, 0
    %p162 = por %p160, %p161
    %p163 = scmp.ne.s32.totalorder %s151, %s152
    %p164 = scmp.eq.s32.totalorder %s18, 1
    %p165 = por %p163, %p164
    %p167 = scmp.ne.s32.totalorder %s152, %s166
    %p168 = scmp.eq.s32.totalorder %s18, 0
    %p169 = por %p167, %p168
    %s170 = ssub.s32 %s19, %s31
    %s171 = ssub.s32 %s20, %s27
    %s172 = sor.u32 %s170, %s171
    %p173 = scmp.eq.s32.totalorder %s172, 0
    %s175 = sadd.s32 %s174, 1
    %s176 = scalar_select %p173, %s174, %s175
    %p179 = pneg %p173
    %p180 = scmp.eq.s32.totalorder %s12, 1
    %p181 = por %p179, %p180
    %p182 = scmp.ne.s32.totalorder %s174, %s177
    %p183 = scmp.eq.s32.totalorder %s12, 0
    %p184 = por %p182, %p183
    %p185 = scmp.ne.s32.totalorder %s174, %s177
    %p186 = scmp.eq.s32.totalorder %s17, 1
    %p187 = por %p185, %p186
    %p188 = scmp.ne.s32.totalorder %s177, %s178
    %p189 = scmp.eq.s32.totalorder %s17, 0
    %p190 = por %p188, %p189
    %p191 = scmp.ne.s32.totalorder %s177, %s178
    %p192 = scmp.eq.s32.totalorder %s18, 1
    %p193 = por %p191, %p192
    %p195 = scmp.ne.s32.totalorder %s178, %s194
    %p196 = scmp.eq.s32.totalorder %s18, 0
    %p197 = por %p195, %p196
    %p198 = scmp.le.s32.totalorder 1, %s12
    %p199 = scmp.lt.s32.totalorder %s12, 3
    %p200 = pnand %p198, %p199
    %p201 = pneg %p200
    // Predicated region
    $region9: #{lstm_decoder_forward.6} parent=5 // pred_check
      _
    $region10: #{lstm_decoder_forward.6} parent=5 // pred_check_branch
      %203 = sbr.rel (%p200) target = $region12
    $region11: #{lstm_decoder_forward.6} parent=5 // pred_region
      %s204 = ssub.s32 %s12, 1
      // Predicated region
      $region13: #{lstm_decoder_forward.6} parent=11 // pred_check
        %p205 = pneg %p99
      $region14: #{lstm_decoder_forward.6} parent=11 // pred_check_branch
        %207 = sbr.rel (%p205) target = $region16
      $region15: #{lstm_decoder_forward.6} parent=11 // pred_region
        _
      $region16: #{lstm_decoder_forward.6} parent=11 // pred_fallthru
        _
      // Predicated region
      $region17: #{lstm_decoder_forward.6} parent=11 // pred_check
        %p208 = pneg %p120
      $region18: #{lstm_decoder_forward.6} parent=11 // pred_check_branch
        %210 = sbr.rel (%p208) target = $region20
      $region19: #{lstm_decoder_forward.6} parent=11 // pred_region
        _
      $region20: #{lstm_decoder_forward.6} parent=11 // pred_fallthru
        _
      // Predicated region
      $region21: #{lstm_decoder_forward.6} parent=11 // pred_check
        %p211 = pneg %p141
      $region22: #{lstm_decoder_forward.6} parent=11 // pred_check_branch
        %213 = sbr.rel (%p211) target = $region24
      $region23: #{lstm_decoder_forward.6} parent=11 // pred_region
        _
      $region24: #{lstm_decoder_forward.6} parent=11 // pred_fallthru
        _
      // Predicated region
      $region25: #{lstm_decoder_forward.6} parent=11 // pred_check
        %p214 = pneg %p162
      $region26: #{lstm_decoder_forward.6} parent=11 // pred_check_branch
        %216 = sbr.rel (%p214) target = $region28
      $region27: #{lstm_decoder_forward.6} parent=11 // pred_region
        _
      $region28: #{lstm_decoder_forward.6} parent=11 // pred_fallthru
        _
    $region12: #{lstm_decoder_forward.6} parent=5 // pred_fallthru
      _
    %p217 = scmp.lt.s32.totalorder %s12, 2
    // Predicated region
    $region29: #{lstm_decoder_forward.6} parent=5 // pred_check
      %p218 = pneg %p217
    $region30: #{lstm_decoder_forward.6} parent=5 // pred_check_branch
      %220 = sbr.rel (%p218) target = $region32
    $region31: #{lstm_decoder_forward.6} parent=5 // pred_region
      // Predicated region
      $region33: #{lstm_decoder_forward.6} parent=31 // pred_check
        %p221 = pneg %p46
      $region34: #{lstm_decoder_forward.6} parent=31 // pred_check_branch
        %223 = sbr.rel (%p221) target = $region36
      $region35: #{lstm_decoder_forward.6} parent=31 // pred_region
        %p224 = scmp.lt.s32.totalorder %s19, 1
        %s225 = scalar_select %p224, %s19, 1
        %p226 = scmp.lt.s32.totalorder %s20, 0
        %s227 = scalar_select %p226, %s20, 0
        %s228 = sadd.s32 %s227, %s225
        %s229 = smul.addr %s228, 4
        %s230 = scalar_lea.vmem %s0, %s229
      $region36: #{lstm_decoder_forward.6} parent=31 // pred_fallthru
        _
      // Predicated region
      $region37: #{lstm_decoder_forward.6} parent=31 // pred_check
        %p231 = pneg %p72
      $region38: #{lstm_decoder_forward.6} parent=31 // pred_check_branch
        %233 = sbr.rel (%p231) target = $region40
      $region39: #{lstm_decoder_forward.6} parent=31 // pred_region
        %p234 = scmp.lt.s32.totalorder %s19, 1
        %s235 = scalar_select %p234, %s19, 1
        %s236 = smul.addr %s235, 4
        %s237 = scalar_lea.vmem %s1, %s236
      $region40: #{lstm_decoder_forward.6} parent=31 // pred_fallthru
        _
    $region32: #{lstm_decoder_forward.6} parent=5 // pred_fallthru
      _
    %p238 = scmp.le.s32.totalorder 1, %s12
    %p239 = scmp.lt.s32.totalorder %s12, 3
    %p240 = pnand %p238, %p239
    %p241 = pneg %p240
    // Predicated region
    $region41: #{lstm_decoder_forward.6} parent=5 // pred_check
      _
    $region42: #{lstm_decoder_forward.6} parent=5 // pred_check_branch
      %243 = sbr.rel (%p240) target = $region44
    $region43: #{lstm_decoder_forward.6} parent=5 // pred_region
      %s244 = ssub.s32 %s12, 1
      %p245 = scmp.lt.s32.totalorder %s21, 1
      %s246 = scalar_select %p245, %s21, 1
      %p247 = scmp.lt.s32.totalorder %s22, 0
      %s248 = scalar_select %p247, %s22, 0
      %s249 = sadd.s32 %s248, %s246
      %s250 = smul.addr %s249, 4
      %s251 = scalar_lea.vmem %s0, %s250
      %p252 = pneg %p52
      %p253 = pneg %p49
      %p254 = scmp.lt.s32.totalorder %s21, 1
      %s255 = scalar_select %p254, %s21, 1
      %s256 = smul.addr %s255, 4
      %s257 = scalar_lea.vmem %s1, %s256
      %p258 = pneg %p78
      %p259 = pneg %p75
      %p260 = pneg %p99
      %p261 = pneg %p96
      %p262 = pneg %p120
      %p263 = pneg %p117
      %p264 = pneg %p141
      %p265 = pneg %p138
      %p266 = pneg %p162
      %p267 = pneg %p159
      %p268 = pneg %p190
      %p269 = pneg %p187
      %p270 = scmp.lt.s32.totalorder %s21, 1
      %s271 = scalar_select %p270, %s21, 1
      %p272 = scmp.lt.s32.totalorder %s22, 0
      %s273 = scalar_select %p272, %s22, 0
      %s274 = sadd.s32 %s273, %s271
      %s275 = smul.addr %s274, 4
      %s276 = scalar_lea.vmem %s6, %s275
      %p277 = scmp.lt.s32.totalorder %s21, 1
      %s278 = scalar_select %p277, %s21, 1
      %p279 = scmp.lt.s32.totalorder %s22, 0
      %s280 = scalar_select %p279, %s22, 0
      %s281 = sadd.s32 %s280, %s278
      %s282 = smul.addr %s281, 4
      %s283 = scalar_lea.vmem %s0, %s282
      %p284 = scmp.lt.s32.totalorder %s21, 1
      %s285 = scalar_select %p284, %s21, 1
      %s286 = smul.addr %s285, 4
      %s287 = scalar_lea.vmem %s1, %s286
      %p288 = scmp.lt.s32.totalorder %s21, 1
      %s289 = scalar_select %p288, %s21, 1
      %p290 = scmp.lt.s32.totalorder %s22, 0
      %s291 = scalar_select %p290, %s22, 0
      %s292 = sadd.s32 %s291, %s289
      %s293 = smul.addr %s292, 4
      %s294 = scalar_lea.vmem %s6, %s293
      %v296 = vld [vmem:[%s283] sm:$0xf]
      %v297 = vld [vmem:[%s287] sm:$0xf]
      %v298 = vld [vmem:[%s2] sm:$0xf]
      %v299 = vld [vmem:[%s2 + $0x4] sm:$0xf]
      %v300 = vld [vmem:[%s2 + $0x8] sm:$0xf]
      %v301 = vld [vmem:[%s2 + $0xc] sm:$0xf]
      %v306 = vunpack.c.l.b16 %v298
      %v307 = vunpack.c.l.b16 %v299
      %v308 = vunpack.c.l.b16 %v300
      %v309 = vunpack.c.l.b16 %v301
      %v310 = vpack.c.b16 %v307, %v306
      %v311 = vpack.c.b16 %v309, %v308
      %vm314 = vcmask 261120
      %v316 = vsel %vm314, %v296, 0
      %318 = vmatprep.subr.bf16.mxu0 0
      %319 = vmatpush1.bf16.msra.mxu0 %v310
      %320 = vmatprep.subr.bf16.mxu0 0
      %321 = vmatpush1.bf16.msra.mxu0 %v311
      %322 = vmatprep.subr.bf16.mxu0 0
      %323 = vmatpush1.bf16.msra.mxu0 0
      %324 = vmatprep.subr.bf16.mxu0 0
      %325 = vmatpush1.bf16.msra.mxu0 0
      %326 = vmatprep.subr.bf16.mxu0 0
      %327 = vmatpush1.bf16.msra.mxu0 0
      %328 = vmatprep.subr.bf16.mxu0 0
      %329 = vmatpush1.bf16.msra.mxu0 0
      %330 = vmatprep.subr.bf16.mxu0 0
      %331 = vmatpush1.bf16.msra.mxu0 0
      %332 = vmatprep.subr.bf16.mxu0 0
      %333 = vmatpush1.bf16.msra.mxu0 0
      %334 = vmatprep.subr.bf16.mxu0 0
      %335 = vmatpush1.bf16.msra.mxu0 0
      %336 = vmatprep.subr.bf16.mxu0 0
      %337 = vmatpush1.bf16.msra.mxu0 0
      %338 = vmatprep.subr.bf16.mxu0 0
      %339 = vmatpush1.bf16.msra.mxu0 0
      %340 = vmatprep.subr.bf16.mxu0 0
      %341 = vmatpush1.bf16.msra.mxu0 0
      %342 = vmatprep.subr.bf16.mxu0 0
      %343 = vmatpush1.bf16.msra.mxu0 0
      %344 = vmatprep.subr.bf16.mxu0 0
      %345 = vmatpush1.bf16.msra.mxu0 0
      %346 = vmatprep.subr.bf16.mxu0 0
      %347 = vmatpush1.bf16.msra.mxu0 0
      %348 = vmatprep.subr.bf16.mxu0 0
      %349 = vmatpush1.bf16.msra.mxu0 0
      %350 = vmatprep.mubr.bf16.mxu0 0
      %351 = vmatmul.mubr.bf16.gmra.mrb[0].mxu0 %v316
      %v352 = vpop.f32.mrb[0].mxu0
      %v353 = vadd.f32 0.0, %v352
      %v354 = vpop.f32.mrb[0].mxu0
      %v355 = vpop.f32.mrb[0].mxu0
      %v356 = vpop.f32.mrb[0].mxu0
      %357 = vdwg.mxu0
      %v358 = vpack.c.bf16 %v353, %v353
      %v360 = vsel %vm314, %v358, 0
      %v363 = vsel %vm314, %v297, 0
      %365 = vmatprep.subr.bf16.mxu0 0
      %366 = vmatpush1.bf16.xpose.msra.mxu0 %v363
      %367 = vmatprep.subr.bf16.mxu0 0
      %368 = vmatpush1.bf16.xpose.msra.mxu0 0
      %369 = vmatprep.subr.bf16.mxu0 0
      %370 = vmatpush1.bf16.xpose.msra.mxu0 0
      %371 = vmatprep.subr.bf16.mxu0 0
      %372 = vmatpush1.bf16.xpose.msra.mxu0 0
      %373 = vmatprep.subr.bf16.mxu0 0
      %374 = vmatpush1.bf16.xpose.msra.mxu0 0
      %375 = vmatprep.subr.bf16.mxu0 0
      %376 = vmatpush1.bf16.xpose.msra.mxu0 0
      %377 = vmatprep.subr.bf16.mxu0 0
      %378 = vmatpush1.bf16.xpose.msra.mxu0 0
      %379 = vmatprep.subr.bf16.mxu0 0
      %380 = vmatpush1.bf16.xpose.msra.mxu0 0
      %381 = vmatprep.subr.bf16.mxu0 0
      %382 = vmatpush1.bf16.xpose.msra.mxu0 0
      %383 = vmatprep.subr.bf16.mxu0 0
      %384 = vmatpush1.bf16.xpose.msra.mxu0 0
      %385 = vmatprep.subr.bf16.mxu0 0
      %386 = vmatpush1.bf16.xpose.msra.mxu0 0
      %387 = vmatprep.subr.bf16.mxu0 0
      %388 = vmatpush1.bf16.xpose.msra.mxu0 0
      %389 = vmatprep.subr.bf16.mxu0 0
      %390 = vmatpush1.bf16.xpose.msra.mxu0 0
      %391 = vmatprep.subr.bf16.mxu0 0
      %392 = vmatpush1.bf16.xpose.msra.mxu0 0
      %393 = vmatprep.subr.bf16.mxu0 0
      %394 = vmatpush1.bf16.xpose.msra.mxu0 0
      %395 = vmatprep.subr.bf16.mxu0 0
      %396 = vmatpush1.bf16.xpose.msra.mxu0 0
      %397 = vmatprep.mubr.bf16.mxu0 0
      %398 = vmatmul.mubr.bf16.gmra.mrb[0].mxu0 %v360
      %v399 = vpop.f32.mrb[0].mxu0
      %v400 = vadd.f32 0.0, %v399
      %v401 = vpop.f32.mrb[0].mxu0
      %v402 = vpop.f32.mrb[0].mxu0
      %v403 = vpop.f32.mrb[0].mxu0
      %404 = vdwg.mxu0
      %vm405 = vcmask 64512
      %v406 = vsel %vm405, %v400, -inf
      %407 = vmax.xlane.f32.xlu0 %v406
      %v408 = vpop.xlane.xlu0 %407
      %v409 = vsub.f32 %v400, %v408
      %v410 = vmul.f32 %v409, 1.442695
      %v411 = vpow.pop %v410
      %v412 = vsel %vm405, %v411, 0.0
      %413 = vadd.xlane.f32.xlu0 %v412
      %v414 = vpop.xlane.xlu0 %413
      %v415 = vrcp.pop %v414
      %v416 = vmul.f32 %v411, %v415
      %v417 = vpack.c.bf16 %v416, %v416
      %v419 = vsel %vm405, %v417, 0
      %vm421 = vcmask 1043456
      %v422 = vsel %vm421, %v297, 0
      %424 = vmatprep.subr.bf16.mxu0 0
      %425 = vmatpush1.bf16.msra.mxu0 %v422
      %426 = vmatprep.subr.bf16.mxu0 0
      %427 = vmatpush1.bf16.msra.mxu0 0
      %428 = vmatprep.subr.bf16.mxu0 0
      %429 = vmatpush1.bf16.msra.mxu0 0
      %430 = vmatprep.subr.bf16.mxu0 0
      %431 = vmatpush1.bf16.msra.mxu0 0
      %432 = vmatprep.subr.bf16.mxu0 0
      %433 = vmatpush1.bf16.msra.mxu0 0
      %434 = vmatprep.subr.bf16.mxu0 0
      %435 = vmatpush1.bf16.msra.mxu0 0
      %436 = vmatprep.subr.bf16.mxu0 0
      %437 = vmatpush1.bf16.msra.mxu0 0
      %438 = vmatprep.subr.bf16.mxu0 0
      %439 = vmatpush1.bf16.msra.mxu0 0
      %440 = vmatprep.subr.bf16.mxu0 0
      %441 = vmatpush1.bf16.msra.mxu0 0
      %442 = vmatprep.subr.bf16.mxu0 0
      %443 = vmatpush1.bf16.msra.mxu0 0
      %444 = vmatprep.subr.bf16.mxu0 0
      %445 = vmatpush1.bf16.msra.mxu0 0
      %446 = vmatprep.subr.bf16.mxu0 0
      %447 = vmatpush1.bf16.msra.mxu0 0
      %448 = vmatprep.subr.bf16.mxu0 0
      %449 = vmatpush1.bf16.msra.mxu0 0
      %450 = vmatprep.subr.bf16.mxu0 0
      %451 = vmatpush1.bf16.msra.mxu0 0
      %452 = vmatprep.subr.bf16.mxu0 0
      %453 = vmatpush1.bf16.msra.mxu0 0
      %454 = vmatprep.subr.bf16.mxu0 0
      %455 = vmatpush1.bf16.msra.mxu0 0
      %456 = vmatprep.mubr.bf16.mxu0 0
      %457 = vmatmul.mubr.bf16.gmra.mrb[0].mxu0 %v419
      %v458 = vpop.f32.mrb[0].mxu0
      %v459 = vadd.f32 0.0, %v458
      %v460 = vpop.f32.mrb[0].mxu0
      %v461 = vpop.f32.mrb[0].mxu0
      %v462 = vpop.f32.mrb[0].mxu0
      %463 = vdwg.mxu0
      %v464 = vpack.c.bf16 %v459, %v459
      %v465 = vld [vmem:[%s3] sm:$0xf]
      %v466 = vld [vmem:[%s3 + $0x4] sm:$0xf]
      %v467 = vld [vmem:[%s3 + $0x8] sm:$0xf]
      %v468 = vld [vmem:[%s3 + $0xc] sm:$0xf]
      %v469 = vld [vmem:[%s4] sm:$0xf]
      %v470 = vld [vmem:[%s4 + $0x4] sm:$0xf]
      %v471 = vld [vmem:[%s4 + $0x8] sm:$0xf]
      %v472 = vld [vmem:[%s4 + $0xc] sm:$0xf]
      %v477 = vunpack.c.l.b16 %v469
      %v478 = vunpack.c.l.b16 %v470
      %v479 = vunpack.c.l.b16 %v471
      %v480 = vunpack.c.l.b16 %v472
      %v481 = vpack.c.b16 %v478, %v477
      %v482 = vpack.c.b16 %v480, %v479
      %485 = vmatprep.subr.bf16.mxu0 0
      %486 = vmatpush1.bf16.msra.mxu0 %v481
      %487 = vmatprep.subr.bf16.mxu0 0
      %488 = vmatpush1.bf16.msra.mxu0 %v482
      %489 = vmatprep.subr.bf16.mxu0 0
      %490 = vmatpush1.bf16.msra.mxu0 0
      %491 = vmatprep.subr.bf16.mxu0 0
      %492 = vmatpush1.bf16.msra.mxu0 0
      %493 = vmatprep.subr.bf16.mxu0 0
      %494 = vmatpush1.bf16.msra.mxu0 0
      %495 = vmatprep.subr.bf16.mxu0 0
      %496 = vmatpush1.bf16.msra.mxu0 0
      %497 = vmatprep.subr.bf16.mxu0 0
      %498 = vmatpush1.bf16.msra.mxu0 0
      %499 = vmatprep.subr.bf16.mxu0 0
      %500 = vmatpush1.bf16.msra.mxu0 0
      %501 = vmatprep.subr.bf16.mxu0 0
      %502 = vmatpush1.bf16.msra.mxu0 0
      %503 = vmatprep.subr.bf16.mxu0 0
      %504 = vmatpush1.bf16.msra.mxu0 0
      %505 = vmatprep.subr.bf16.mxu0 0
      %506 = vmatpush1.bf16.msra.mxu0 0
      %507 = vmatprep.subr.bf16.mxu0 0
      %508 = vmatpush1.bf16.msra.mxu0 0
      %509 = vmatprep.subr.bf16.mxu0 0
      %510 = vmatpush1.bf16.msra.mxu0 0
      %511 = vmatprep.subr.bf16.mxu0 0
      %512 = vmatpush1.bf16.msra.mxu0 0
      %513 = vmatprep.subr.bf16.mxu0 0
      %514 = vmatpush1.bf16.msra.mxu0 0
      %515 = vmatprep.subr.bf16.mxu0 0
      %516 = vmatpush1.bf16.msra.mxu0 0
      %517 = vmatprep.mubr.bf16.mxu0 0
      %518 = vmatmul.mubr.bf16.gmra.mrb[0].mxu0 %v316
      %v519 = vpop.f32.mrb[0].mxu0
      %v520 = vadd.f32 0.0, %v519
      %v521 = vpop.f32.mrb[0].mxu0
      %v522 = vpop.f32.mrb[0].mxu0
      %v523 = vpop.f32.mrb[0].mxu0
      %524 = vdwg.mxu0
      %v529 = vunpack.c.l.b16 %v465
      %v530 = vunpack.c.l.b16 %v466
      %v531 = vunpack.c.l.b16 %v467
      %v532 = vunpack.c.l.b16 %v468
      %v533 = vpack.c.b16 %v530, %v529
      %v534 = vpack.c.b16 %v532, %v531
      %v538 = vsel %vm314, %v464, 0
      %540 = vmatprep.subr.bf16.mxu0 0
      %541 = vmatpush1.bf16.msra.mxu0 %v533
      %542 = vmatprep.subr.bf16.mxu0 0
      %543 = vmatpush1.bf16.msra.mxu0 %v534
      %544 = vmatprep.subr.bf16.mxu0 0
      %545 = vmatpush1.bf16.msra.mxu0 0
      %546 = vmatprep.subr.bf16.mxu0 0
      %547 = vmatpush1.bf16.msra.mxu0 0
      %548 = vmatprep.subr.bf16.mxu0 0
      %549 = vmatpush1.bf16.msra.mxu0 0
      %550 = vmatprep.subr.bf16.mxu0 0
      %551 = vmatpush1.bf16.msra.mxu0 0
      %552 = vmatprep.subr.bf16.mxu0 0
      %553 = vmatpush1.bf16.msra.mxu0 0
      %554 = vmatprep.subr.bf16.mxu0 0
      %555 = vmatpush1.bf16.msra.mxu0 0
      %556 = vmatprep.subr.bf16.mxu0 0
      %557 = vmatpush1.bf16.msra.mxu0 0
      %558 = vmatprep.subr.bf16.mxu0 0
      %559 = vmatpush1.bf16.msra.mxu0 0
      %560 = vmatprep.subr.bf16.mxu0 0
      %561 = vmatpush1.bf16.msra.mxu0 0
      %562 = vmatprep.subr.bf16.mxu0 0
      %563 = vmatpush1.bf16.msra.mxu0 0
      %564 = vmatprep.subr.bf16.mxu0 0
      %565 = vmatpush1.bf16.msra.mxu0 0
      %566 = vmatprep.subr.bf16.mxu0 0
      %567 = vmatpush1.bf16.msra.mxu0 0
      %568 = vmatprep.subr.bf16.mxu0 0
      %569 = vmatpush1.bf16.msra.mxu0 0
      %570 = vmatprep.subr.bf16.mxu0 0
      %571 = vmatpush1.bf16.msra.mxu0 0
      %572 = vmatprep.mubr.bf16.mxu0 0
      %573 = vmatmul.mubr.bf16.gmra.mrb[0].mxu0 %v538
      %v574 = vpop.f32.mrb[0].mxu0
      %v575 = vadd.f32 %v520, %v574
      %v576 = vpop.f32.mrb[0].mxu0
      %v577 = vpop.f32.mrb[0].mxu0
      %v578 = vpop.f32.mrb[0].mxu0
      %579 = vdwg.mxu0
      %v580 = vld [vmem:[%s5] sm:$0x1]
      %v582 = vlaneseq
      %v583 = vshrl.u32 %v582, 7
      %v584 = vsub.s32 0, %v583
      %v585 = vrot.slane %v580, %v584
      %v587 = vadd.f32 %v575, %v585
      %v588 = vtanh.pop %v587
      %v589 = vpack.c.bf16 %v588, %v588
      %vm590 = vcmask 257024
      %591 = vst.msk [vmem:[%s294] sm:$0xf] %vm590, %v589
      %p592 = scmp.lt.s32.totalorder %s21, 1
      %s593 = scalar_select %p592, %s21, 1
      %p594 = scmp.lt.s32.totalorder %s22, 0
      %s595 = scalar_select %p594, %s22, 0
      %s596 = sadd.s32 %s595, %s593
      %s597 = smul.addr %s596, 4
      %s598 = scalar_lea.vmem %s6, %s597
      // Predicated region
      $region45: #{lstm_decoder_forward.6} parent=43 // pred_check
        %p599 = pneg %p187
      $region46: #{lstm_decoder_forward.6} parent=43 // pred_check_branch
        %601 = sbr.rel (%p599) target = $region48
      $region47: #{lstm_decoder_forward.6} parent=43 // pred_region
        _
      $region48: #{lstm_decoder_forward.6} parent=43 // pred_fallthru
        _
    $region44: #{lstm_decoder_forward.6} parent=5 // pred_fallthru
      _
    %p602 = scmp.le.s32.totalorder 2, %s12
    // Predicated region
    $region49: #{lstm_decoder_forward.6} parent=5 // pred_check
      %p603 = pneg %p602
    $region50: #{lstm_decoder_forward.6} parent=5 // pred_check_branch
      %605 = sbr.rel (%p603) target = $region52
    $region51: #{lstm_decoder_forward.6} parent=5 // pred_region
      %s606 = ssub.s32 %s12, 2
      // Predicated region
      $region53: #{lstm_decoder_forward.6} parent=51 // pred_check
        %p607 = pneg %p193
      $region54: #{lstm_decoder_forward.6} parent=51 // pred_check_branch
        %609 = sbr.rel (%p607) target = $region56
      $region55: #{lstm_decoder_forward.6} parent=51 // pred_region
        %p610 = scmp.lt.s32.totalorder %s23, 1
        %s611 = scalar_select %p610, %s23, 1
        %p612 = scmp.lt.s32.totalorder %s24, 0
        %s613 = scalar_select %p612, %s24, 0
        %s614 = sadd.s32 %s613, %s611
        %s615 = smul.addr %s614, 4
        %s616 = scalar_lea.vmem %s6, %s615
      $region56: #{lstm_decoder_forward.6} parent=51 // pred_fallthru
        _
    $region52: #{lstm_decoder_forward.6} parent=5 // pred_fallthru
      _
  $region6: #{lstm_decoder_forward.6} parent=0 // loop_footer
    %s16 = sadd.s32 1, %s12
  $region7: #{lstm_decoder_forward.6} parent=0 // loop_footer_branch
    %11 = sbr.rel target = $region3
  $region8: #{lstm_decoder_forward.6} parent=0 // loop_exit
    _

// kernel: lstm_decoder_forward.5
$region0: #{lstm_decoder_forward.5}
  #allocation0 [shape = 'u32[]', space=smem, size = 0x4, offset = 0x4, fixed_abs, tag = 'smem constant byte address 0x4 - core index']
  #allocation1 [shape = 'u32[144,128]{1,0:T(1,128)}', space=vmem, size = 0x12000, scoped, tag = 'internal scratch']
  #allocation2 [shape = 'f32[2,32]{1,0:T(2,128)}', space=vmem, size = 0x400, scoped, tag = 'scratch operand']
  #allocation3 [shape = 'f32[2,32]{1,0:T(2,128)}', space=vmem, size = 0x400, scoped, tag = 'scratch operand']
  %s0 = inlined_call_operand.vmem [shape: bf16[8,2,128], index: 0, kind: input, shape index: {}]
  %s1 = inlined_call_operand.vmem [shape: f32[2,32], index: 1, kind: input, shape index: {}]
  %s2 = inlined_call_operand.vmem [shape: f32[2,32], index: 2, kind: input, shape index: {}]
  %s3 = inlined_call_operand.vmem [shape: bf16[32,128], index: 3, kind: input, shape index: {}]
  %s4 = inlined_call_operand.vmem [shape: bf16[8,2,32], index: 4, kind: output, shape index: {0}]
  %s5 = inlined_call_operand.hbm [shape: f32[2,32], index: 5, kind: output, shape index: {1}]
  %s6 = inlined_call_operand.hbm [shape: f32[2,32], index: 6, kind: output, shape index: {2}]
  %7 = xla_tuple %s4, %s5, %s6
  %s8 = sld [smem:[#allocation0]]
  $region50: #{lstm_decoder_forward.5} parent=0
    _
  %s10 = ssub.s32 1, %s8
  %s11 = scalar_select 0, %s10, %s8
  $region1: #{lstm_decoder_forward.5} parent=0
    #allocation4 [shape = 'u8[1024]{0}', space=vmem, size = 0x400, scoped, tag = 'output window, operand 1, single buffered']
    #allocation5 [shape = 's32[1]{0}', space=sflag, size = 0x4, scoped, tag = 'scoped memory for lstm_decoder_forward.5']
    #allocation6 [shape = 'u8[1024]{0}', space=vmem, size = 0x400, scoped, tag = 'output window, operand 2, single buffered']
    #allocation7 [shape = 's32[1]{0}', space=sflag, size = 0x4, scoped, tag = 'scoped memory for lstm_decoder_forward.5']
    %12 = vsyncpa [#allocation5], 0
    %13 = vsyncpa [#allocation7], 0
    // Predicated region
    $region2: #{lstm_decoder_forward.5} parent=1 // pred_check
      _
    $region3: #{lstm_decoder_forward.5} parent=1 // pred_check_branch
      %15 = sbr.rel (0) target = $region5
    $region4: #{lstm_decoder_forward.5} parent=1 // pred_region
      _
    $region5: #{lstm_decoder_forward.5} parent=1 // pred_fallthru
      _
    // Predicated region
    $region6: #{lstm_decoder_forward.5} parent=1 // pred_check
      _
    $region7: #{lstm_decoder_forward.5} parent=1 // pred_check_branch
      %17 = sbr.rel (0) target = $region9
    $region8: #{lstm_decoder_forward.5} parent=1 // pred_region
      _
    $region9: #{lstm_decoder_forward.5} parent=1 // pred_fallthru
      _
    // Predicated region
    $region10: #{lstm_decoder_forward.5} parent=1 // pred_check
      _
    $region11: #{lstm_decoder_forward.5} parent=1 // pred_check_branch
      %19 = sbr.rel (0) target = $region13
    $region12: #{lstm_decoder_forward.5} parent=1 // pred_region
      _
    $region13: #{lstm_decoder_forward.5} parent=1 // pred_fallthru
      _
    // Predicated region
    $region14: #{lstm_decoder_forward.5} parent=1 // pred_check
      _
    $region15: #{lstm_decoder_forward.5} parent=1 // pred_check_branch
      %21 = sbr.rel (0) target = $region17
    $region16: #{lstm_decoder_forward.5} parent=1 // pred_region
      _
    $region17: #{lstm_decoder_forward.5} parent=1 // pred_fallthru
      _
    %p23 = scmp.eq.s32.totalorder 0, 0
    // Predicated region
    $region18: #{lstm_decoder_forward.5} parent=1 // pred_check
      %p24 = pneg %p23
    $region19: #{lstm_decoder_forward.5} parent=1 // pred_check_branch
      %26 = sbr.rel (%p24) target = $region21
    $region20: #{lstm_decoder_forward.5} parent=1 // pred_region
      %v27 = vld [vmem:[%s1] sm:$0x3]
      %vm28 = vcmask 254976
      %29 = vst.msk [vmem:[#allocation2] sm:$0x3] %vm28, %v27
      %v30 = vld [vmem:[%s2] sm:$0x3]
      %31 = vst.msk [vmem:[#allocation3] sm:$0x3] %vm28, %v30
    $region21: #{lstm_decoder_forward.5} parent=1 // pred_fallthru
      _
    %v32 = vld [vmem:[#allocation2] sm:$0x3]
    %v33 = vld [vmem:[#allocation3] sm:$0x3]
    %v34 = vld [vmem:[%s0] sm:$0x1]
    %v35 = vunpack.c.l.bf16 %v34
    %v36 = vpack.c.bf16 %v32, %v32
    %v37 = vld [vmem:[%s3] sm:$0xf]
    %v38 = vld [vmem:[%s3 + $0x4] sm:$0xf]
    %v39 = vld [vmem:[%s3 + $0x8] sm:$0xf]
    %v40 = vld [vmem:[%s3 + $0xc] sm:$0xf]
    %v45 = vunpack.c.l.b16 %v37
    %v46 = vunpack.c.l.b16 %v38
    %v47 = vunpack.c.l.b16 %v39
    %v48 = vunpack.c.l.b16 %v40
    %v49 = vpack.c.b16 %v46, %v45
    %v50 = vpack.c.b16 %v48, %v47
    %vm53 = vcmask 261120
    %v55 = vsel %vm53, %v36, 0
    %57 = vmatprep.subr.bf16.mxu0 0
    %58 = vmatpush1.bf16.msra.mxu0 %v49
    %59 = vmatprep.subr.bf16.mxu0 0
    %60 = vmatpush1.bf16.msra.mxu0 %v50
    %61 = vmatprep.subr.bf16.mxu0 0
    %62 = vmatpush1.bf16.msra.mxu0 0
    %63 = vmatprep.subr.bf16.mxu0 0
    %64 = vmatpush1.bf16.msra.mxu0 0
    %65 = vmatprep.subr.bf16.mxu0 0
    %66 = vmatpush1.bf16.msra.mxu0 0
    %67 = vmatprep.subr.bf16.mxu0 0
    %68 = vmatpush1.bf16.msra.mxu0 0
    %69 = vmatprep.subr.bf16.mxu0 0
    %70 = vmatpush1.bf16.msra.mxu0 0
    %71 = vmatprep.subr.bf16.mxu0 0
    %72 = vmatpush1.bf16.msra.mxu0 0
    %73 = vmatprep.subr.bf16.mxu0 0
    %74 = vmatpush1.bf16.msra.mxu0 0
    %75 = vmatprep.subr.bf16.mxu0 0
    %76 = vmatpush1.bf16.msra.mxu0 0
    %77 = vmatprep.subr.bf16.mxu0 0
    %78 = vmatpush1.bf16.msra.mxu0 0
    %79 = vmatprep.subr.bf16.mxu0 0
    %80 = vmatpush1.bf16.msra.mxu0 0
    %81 = vmatprep.subr.bf16.mxu0 0
    %82 = vmatpush1.bf16.msra.mxu0 0
    %83 = vmatprep.subr.bf16.mxu0 0
    %84 = vmatpush1.bf16.msra.mxu0 0
    %85 = vmatprep.subr.bf16.mxu0 0
    %86 = vmatpush1.bf16.msra.mxu0 0
    %87 = vmatprep.subr.bf16.mxu0 0
    %88 = vmatpush1.bf16.msra.mxu0 0
    %89 = vmatprep.mubr.bf16.mxu0 0
    %90 = vmatmul.mubr.bf16.gmra.mrb[0].mxu0 %v55
    %v91 = vpop.f32.mrb[0].mxu0
    %v92 = vadd.f32 0.0, %v91
    %v93 = vpop.f32.mrb[0].mxu0
    %v94 = vpop.f32.mrb[0].mxu0
    %v95 = vpop.f32.mrb[0].mxu0
    %96 = vdwg.mxu0
    %v97 = vadd.f32 %v35, %v92
    %v98 = vxor.u32 %v97, 2147483648
    %v99 = vmul.f32 %v98, 1.442695
    %v100 = vpow.pop %v99
    %v101 = vadd.f32 %v100, 1.0
    %v102 = vrcp.pop %v101
    %v103 = vmul.f32 1.0, %v102
    %v104 = vtanh.pop %v97
    %v107 = vunpack.c.l.s4 1983009808
    %v108 = vunpack.c.0.s8 %v107
    %v109 = vlaneseq
    %v110 = vshrl.u32 %v109, 7
    %v111 = vsub.s32 %v108, %v110
    %v112 = vrot.slane %v33, %v111
    %113 = vrot.lane.b32.xlu0 %v112, 32
    %v114 = vpop.permute.xlu0 %113
    %v116 = vmul.f32 %v103, %v114
    %118 = vrot.lane.b32.xlu0 %v104, 64
    %v119 = vpop.permute.xlu0 %118
    %v121 = vmul.f32 %v103, %v119
    %123 = vrot.lane.b32.xlu0 %v121, 32
    %v124 = vpop.permute.xlu0 %123
    %v126 = vadd.f32 %v116, %v124
    %v127 = vtanh.pop %v126
    %129 = vrot.lane.b32.xlu0 %v127, 64
    %v130 = vpop.permute.xlu0 %129
    %v132 = vmul.f32 %v103, %v130
    %v133 = vpack.c.bf16 %v132, %v132
    %v136 = vunpack.c.l.s4 1966171168
    %v137 = vunpack.c.0.s8 %v136
    %v138 = vlaneseq
    %v139 = vshrl.u32 %v138, 7
    %v140 = vsub.s32 %v137, %v139
    %v141 = vrot.slane %v133, %v140
    %v143 = vunpack.c.l.s4 1966171168
    %v144 = vunpack.c.0.s8 %v143
    %v145 = vlaneseq
    %v146 = vshrl.u32 %v145, 7
    %v147 = vsub.s32 %v144, %v146
    %v148 = vrot.slane %v141, %v147
    %149 = vrot.lane.b32.xlu0 %v148, 32
    %v150 = vpop.permute.xlu0 %149
    %vm152 = vcmask 253952
    %153 = vst.msk [vmem:[%s4] sm:$0x1] %vm152, %v150
    %s154 = scalar_lea.vmem %s0, 1
    %v155 = vld [vmem:[%s154] sm:$0x1]
    %v156 = vunpack.c.l.bf16 %v155
    %v157 = vld [vmem:[%s3] sm:$0xf]
    %v158 = vld [vmem:[%s3 + $0x4] sm:$0xf]
    %v159 = vld [vmem:[%s3 + $0x8] sm:$0xf]
    %v160 = vld [vmem:[%s3 + $0xc] sm:$0xf]
    %161 = vrot.lane.b32.xlu0 %v133, 32
    %v162 = vpop.permute.xlu0 %161
    %v167 = vunpack.c.l.b16 %v157
    %v168 = vunpack.c.l.b16 %v158
    %v169 = vunpack.c.l.b16 %v159
    %v170 = vunpack.c.l.b16 %v160
    %v171 = vpack.c.b16 %v168, %v167
    %v172 = vpack.c.b16 %v170, %v169
    %v176 = vsel %vm53, %v162, 0
    %178 = vmatprep.subr.bf16.mxu0 0
    %179 = vmatpush1.bf16.msra.mxu0 %v171
    %180 = vmatprep.subr.bf16.mxu0 0
    %181 = vmatpush1.bf16.msra.mxu0 %v172
    %182 = vmatprep.subr.bf16.mxu0 0
    %183 = vmatpush1.bf16.msra.mxu0 0
    %184 = vmatprep.subr.bf16.mxu0 0
    %185 = vmatpush1.bf16.msra.mxu0 0
    %186 = vmatprep.subr.bf16.mxu0 0
    %187 = vmatpush1.bf16.msra.mxu0 0
    %188 = vmatprep.subr.bf16.mxu0 0
    %189 = vmatpush1.bf16.msra.mxu0 0
    %190 = vmatprep.subr.bf16.mxu0 0
    %191 = vmatpush1.bf16.msra.mxu0 0
    %192 = vmatprep.subr.bf16.mxu0 0
    %193 = vmatpush1.bf16.msra.mxu0 0
    %194 = vmatprep.subr.bf16.mxu0 0
    %195 = vmatpush1.bf16.msra.mxu0 0
    %196 = vmatprep.subr.bf16.mxu0 0
    %197 = vmatpush1.bf16.msra.mxu0 0
    %198 = vmatprep.subr.bf16.mxu0 0
    %199 = vmatpush1.bf16.msra.mxu0 0
    %200 = vmatprep.subr.bf16.mxu0 0
    %201 = vmatpush1.bf16.msra.mxu0 0
    %202 = vmatprep.subr.bf16.mxu0 0
    %203 = vmatpush1.bf16.msra.mxu0 0
    %204 = vmatprep.subr.bf16.mxu0 0
    %205 = vmatpush1.bf16.msra.mxu0 0
    %206 = vmatprep.subr.bf16.mxu0 0
    %207 = vmatpush1.bf16.msra.mxu0 0
    %208 = vmatprep.subr.bf16.mxu0 0
    %209 = vmatpush1.bf16.msra.mxu0 0
    %210 = vmatprep.mubr.bf16.mxu0 0
    %211 = vmatmul.mubr.bf16.gmra.mrb[0].mxu0 %v176
    %v212 = vpop.f32.mrb[0].mxu0
    %v213 = vadd.f32 0.0, %v212
    %v214 = vpop.f32.mrb[0].mxu0
    %v215 = vpop.f32.mrb[0].mxu0
    %v216 = vpop.f32.mrb[0].mxu0
    %217 = vdwg.mxu0
    %v218 = vadd.f32 %v156, %v213
    %v219 = vxor.u32 %v218, 2147483648
    %v220 = vmul.f32 %v219, 1.442695
    %v221 = vpow.pop %v220
    %v222 = vadd.f32 %v221, 1.0
    %v223 = vrcp.pop %v222
    %v224 = vmul.f32 1.0, %v223
    %v225 = vtanh.pop %v218
    %v226 = vmul.f32 %v224, %v126
    %228 = vrot.lane.b32.xlu0 %v225, 64
    %v229 = vpop.permute.xlu0 %228
    %v231 = vmul.f32 %v224, %v229
    %233 = vrot.lane.b32.xlu0 %v231, 32
    %v234 = vpop.permute.xlu0 %233
    %v236 = vadd.f32 %v226, %v234
    %v237 = vtanh.pop %v236
    %239 = vrot.lane.b32.xlu0 %v237, 64
    %v240 = vpop.permute.xlu0 %239
    %v242 = vmul.f32 %v224, %v240
    %v243 = vpack.c.bf16 %v242, %v242
    %v246 = vunpack.c.l.s4 1966171168
    %v247 = vunpack.c.0.s8 %v246
    %v248 = vlaneseq
    %v249 = vshrl.u32 %v248, 7
    %v250 = vsub.s32 %v247, %v249
    %v251 = vrot.slane %v243, %v250
    %v253 = vunpack.c.l.s4 1966171168
    %v254 = vunpack.c.0.s8 %v253
    %v255 = vlaneseq
    %v256 = vshrl.u32 %v255, 7
    %v257 = vsub.s32 %v254, %v256
    %v258 = vrot.slane %v251, %v257
    %259 = vrot.lane.b32.xlu0 %v258, 32
    %v260 = vpop.permute.xlu0 %259
    %s262 = scalar_lea.vmem %s4, 1
    %263 = vst.msk [vmem:[%s262] sm:$0x1] %vm152, %v260
    %s264 = scalar_lea.vmem %s0, 2
    %v265 = vld [vmem:[%s264] sm:$0x1]
    %v266 = vunpack.c.l.bf16 %v265
    %v267 = vld [vmem:[%s3] sm:$0xf]
    %v268 = vld [vmem:[%s3 + $0x4] sm:$0xf]
    %v269 = vld [vmem:[%s3 + $0x8] sm:$0xf]
    %v270 = vld [vmem:[%s3 + $0xc] sm:$0xf]
    %271 = vrot.lane.b32.xlu0 %v243, 32
    %v272 = vpop.permute.xlu0 %271
    %v277 = vunpack.c.l.b16 %v267
    %v278 = vunpack.c.l.b16 %v268
    %v279 = vunpack.c.l.b16 %v269
    %v280 = vunpack.c.l.b16 %v270
    %v281 = vpack.c.b16 %v278, %v277
    %v282 = vpack.c.b16 %v280, %v279
    %v286 = vsel %vm53, %v272, 0
    %288 = vmatprep.subr.bf16.mxu0 0
    %289 = vmatpush1.bf16.msra.mxu0 %v281
    %290 = vmatprep.subr.bf16.mxu0 0
    %291 = vmatpush1.bf16.msra.mxu0 %v282
    %292 = vmatprep.subr.bf16.mxu0 0
    %293 = vmatpush1.bf16.msra.mxu0 0
    %294 = vmatprep.subr.bf16.mxu0 0
    %295 = vmatpush1.bf16.msra.mxu0 0
    %296 = vmatprep.subr.bf16.mxu0 0
    %297 = vmatpush1.bf16.msra.mxu0 0
    %298 = vmatprep.subr.bf16.mxu0 0
    %299 = vmatpush1.bf16.msra.mxu0 0
    %300 = vmatprep.subr.bf16.mxu0 0
    %301 = vmatpush1.bf16.msra.mxu0 0
    %302 = vmatprep.subr.bf16.mxu0 0
    %303 = vmatpush1.bf16.msra.mxu0 0
    %304 = vmatprep.subr.bf16.mxu0 0
    %305 = vmatpush1.bf16.msra.mxu0 0
    %306 = vmatprep.subr.bf16.mxu0 0
    %307 = vmatpush1.bf16.msra.mxu0 0
    %308 = vmatprep.subr.bf16.mxu0 0
    %309 = vmatpush1.bf16.msra.mxu0 0
    %310 = vmatprep.subr.bf16.mxu0 0
    %311 = vmatpush1.bf16.msra.mxu0 0
    %312 = vmatprep.subr.bf16.mxu0 0
    %313 = vmatpush1.bf16.msra.mxu0 0
    %314 = vmatprep.subr.bf16.mxu0 0
    %315 = vmatpush1.bf16.msra.mxu0 0
    %316 = vmatprep.subr.bf16.mxu0 0
    %317 = vmatpush1.bf16.msra.mxu0 0
    %318 = vmatprep.subr.bf16.mxu0 0
    %319 = vmatpush1.bf16.msra.mxu0 0
    %320 = vmatprep.mubr.bf16.mxu0 0
    %321 = vmatmul.mubr.bf16.gmra.mrb[0].mxu0 %v286
    %v322 = vpop.f32.mrb[0].mxu0
    %v323 = vadd.f32 0.0, %v322
    %v324 = vpop.f32.mrb[0].mxu0
    %v325 = vpop.f32.mrb[0].mxu0
    %v326 = vpop.f32.mrb[0].mxu0
    %327 = vdwg.mxu0
    %v328 = vadd.f32 %v266, %v323
    %v329 = vxor.u32 %v328, 2147483648
    %v330 = vmul.f32 %v329, 1.442695
    %v331 = vpow.pop %v330
    %v332 = vadd.f32 %v331, 1.0
    %v333 = vrcp.pop %v332
    %v334 = vmul.f32 1.0, %v333
    %v335 = vtanh.pop %v328
    %v336 = vmul.f32 %v334, %v236
    %338 = vrot.lane.b32.xlu0 %v335, 64
    %v339 = vpop.permute.xlu0 %338
    %v341 = vmul.f32 %v334, %v339
    %343 = vrot.lane.b32.xlu0 %v341, 32
    %v344 = vpop.permute.xlu0 %343
    %v346 = vadd.f32 %v336, %v344
    %v347 = vtanh.pop %v346
    %349 = vrot.lane.b32.xlu0 %v347, 64
    %v350 = vpop.permute.xlu0 %349
    %v352 = vmul.f32 %v334, %v350
    %v353 = vpack.c.bf16 %v352, %v352
    %v356 = vunpack.c.l.s4 1966171168
    %v357 = vunpack.c.0.s8 %v356
    %v358 = vlaneseq
    %v359 = vshrl.u32 %v358, 7
    %v360 = vsub.s32 %v357, %v359
    %v361 = vrot.slane %v353, %v360
    %v363 = vunpack.c.l.s4 1966171168
    %v364 = vunpack.c.0.s8 %v363
    %v365 = vlaneseq
    %v366 = vshrl.u32 %v365, 7
    %v367 = vsub.s32 %v364, %v366
    %v368 = vrot.slane %v361, %v367
    %369 = vrot.lane.b32.xlu0 %v368, 32
    %v370 = vpop.permute.xlu0 %369
    %s372 = scalar_lea.vmem %s4, 2
    %373 = vst.msk [vmem:[%s372] sm:$0x1] %vm152, %v370
    %s374 = scalar_lea.vmem %s0, 3
    %v375 = vld [vmem:[%s374] sm:$0x1]
    %v376 = vunpack.c.l.bf16 %v375
    %v377 = vld [vmem:[%s3] sm:$0xf]
    %v378 = vld [vmem:[%s3 + $0x4] sm:$0xf]
    %v379 = vld [vmem:[%s3 + $0x8] sm:$0xf]
    %v380 = vld [vmem:[%s3 + $0xc] sm:$0xf]
    %381 = vrot.lane.b32.xlu0 %v353, 32
    %v382 = vpop.permute.xlu0 %381
    %v387 = vunpack.c.l.b16 %v377
    %v388 = vunpack.c.l.b16 %v378
    %v389 = vunpack.c.l.b16 %v379
    %v390 = vunpack.c.l.b16 %v380
    %v391 = vpack.c.b16 %v388, %v387
    %v392 = vpack.c.b16 %v390, %v389
    %v396 = vsel %vm53, %v382, 0
    %398 = vmatprep.subr.bf16.mxu0 0
    %399 = vmatpush1.bf16.msra.mxu0 %v391
    %400 = vmatprep.subr.bf16.mxu0 0
    %401 = vmatpush1.bf16.msra.mxu0 %v392
    %402 = vmatprep.subr.bf16.mxu0 0
    %403 = vmatpush1.bf16.msra.mxu0 0
    %404 = vmatprep.subr.bf16.mxu0 0
    %405 = vmatpush1.bf16.msra.mxu0 0
    %406 = vmatprep.subr.bf16.mxu0 0
    %407 = vmatpush1.bf16.msra.mxu0 0
    %408 = vmatprep.subr.bf16.mxu0 0
    %409 = vmatpush1.bf16.msra.mxu0 0
    %410 = vmatprep.subr.bf16.mxu0 0
    %411 = vmatpush1.bf16.msra.mxu0 0
    %412 = vmatprep.subr.bf16.mxu0 0
    %413 = vmatpush1.bf16.msra.mxu0 0
    %414 = vmatprep.subr.bf16.mxu0 0
    %415 = vmatpush1.bf16.msra.mxu0 0
    %416 = vmatprep.subr.bf16.mxu0 0
    %417 = vmatpush1.bf16.msra.mxu0 0
    %418 = vmatprep.subr.bf16.mxu0 0
    %419 = vmatpush1.bf16.msra.mxu0 0
    %420 = vmatprep.subr.bf16.mxu0 0
    %421 = vmatpush1.bf16.msra.mxu0 0
    %422 = vmatprep.subr.bf16.mxu0 0
    %423 = vmatpush1.bf16.msra.mxu0 0
    %424 = vmatprep.subr.bf16.mxu0 0
    %425 = vmatpush1.bf16.msra.mxu0 0
    %426 = vmatprep.subr.bf16.mxu0 0
    %427 = vmatpush1.bf16.msra.mxu0 0
    %428 = vmatprep.subr.bf16.mxu0 0
    %429 = vmatpush1.bf16.msra.mxu0 0
    %430 = vmatprep.mubr.bf16.mxu0 0
    %431 = vmatmul.mubr.bf16.gmra.mrb[0].mxu0 %v396
    %v432 = vpop.f32.mrb[0].mxu0
    %v433 = vadd.f32 0.0, %v432
    %v434 = vpop.f32.mrb[0].mxu0
    %v435 = vpop.f32.mrb[0].mxu0
    %v436 = vpop.f32.mrb[0].mxu0
    %437 = vdwg.mxu0
    %v438 = vadd.f32 %v376, %v433
    %v439 = vxor.u32 %v438, 2147483648
    %v440 = vmul.f32 %v439, 1.442695
    %v441 = vpow.pop %v440
    %v442 = vadd.f32 %v441, 1.0
    %v443 = vrcp.pop %v442
    %v444 = vmul.f32 1.0, %v443
    %v445 = vtanh.pop %v438
    %v446 = vmul.f32 %v444, %v346
    %448 = vrot.lane.b32.xlu0 %v445, 64
    %v449 = vpop.permute.xlu0 %448
    %v451 = vmul.f32 %v444, %v449
    %453 = vrot.lane.b32.xlu0 %v451, 32
    %v454 = vpop.permute.xlu0 %453
    %v456 = vadd.f32 %v446, %v454
    %v457 = vtanh.pop %v456
    %459 = vrot.lane.b32.xlu0 %v457, 64
    %v460 = vpop.permute.xlu0 %459
    %v462 = vmul.f32 %v444, %v460
    %v463 = vpack.c.bf16 %v462, %v462
    %v466 = vunpack.c.l.s4 1966171168
    %v467 = vunpack.c.0.s8 %v466
    %v468 = vlaneseq
    %v469 = vshrl.u32 %v468, 7
    %v470 = vsub.s32 %v467, %v469
    %v471 = vrot.slane %v463, %v470
    %v473 = vunpack.c.l.s4 1966171168
    %v474 = vunpack.c.0.s8 %v473
    %v475 = vlaneseq
    %v476 = vshrl.u32 %v475, 7
    %v477 = vsub.s32 %v474, %v476
    %v478 = vrot.slane %v471, %v477
    %479 = vrot.lane.b32.xlu0 %v478, 32
    %v480 = vpop.permute.xlu0 %479
    %s482 = scalar_lea.vmem %s4, 3
    %483 = vst.msk [vmem:[%s482] sm:$0x1] %vm152, %v480
    %s484 = scalar_lea.vmem %s0, 4
    %v485 = vld [vmem:[%s484] sm:$0x1]
    %v486 = vunpack.c.l.bf16 %v485
    %v487 = vld [vmem:[%s3] sm:$0xf]
    %v488 = vld [vmem:[%s3 + $0x4] sm:$0xf]
    %v489 = vld [vmem:[%s3 + $0x8] sm:$0xf]
    %v490 = vld [vmem:[%s3 + $0xc] sm:$0xf]
    %491 = vrot.lane.b32.xlu0 %v463, 32
    %v492 = vpop.permute.xlu0 %491
    %v497 = vunpack.c.l.b16 %v487
    %v498 = vunpack.c.l.b16 %v488
    %v499 = vunpack.c.l.b16 %v489
    %v500 = vunpack.c.l.b16 %v490
    %v501 = vpack.c.b16 %v498, %v497
    %v502 = vpack.c.b16 %v500, %v499
    %v506 = vsel %vm53, %v492, 0
    %508 = vmatprep.subr.bf16.mxu0 0
    %509 = vmatpush1.bf16.msra.mxu0 %v501
    %510 = vmatprep.subr.bf16.mxu0 0
    %511 = vmatpush1.bf16.msra.mxu0 %v502
    %512 = vmatprep.subr.bf16.mxu0 0
    %513 = vmatpush1.bf16.msra.mxu0 0
    %514 = vmatprep.subr.bf16.mxu0 0
    %515 = vmatpush1.bf16.msra.mxu0 0
    %516 = vmatprep.subr.bf16.mxu0 0
    %517 = vmatpush1.bf16.msra.mxu0 0
    %518 = vmatprep.subr.bf16.mxu0 0
    %519 = vmatpush1.bf16.msra.mxu0 0
    %520 = vmatprep.subr.bf16.mxu0 0
    %521 = vmatpush1.bf16.msra.mxu0 0
    %522 = vmatprep.subr.bf16.mxu0 0
    %523 = vmatpush1.bf16.msra.mxu0 0
    %524 = vmatprep.subr.bf16.mxu0 0
    %525 = vmatpush1.bf16.msra.mxu0 0
    %526 = vmatprep.subr.bf16.mxu0 0
    %527 = vmatpush1.bf16.msra.mxu0 0
    %528 = vmatprep.subr.bf16.mxu0 0
    %529 = vmatpush1.bf16.msra.mxu0 0
    %530 = vmatprep.subr.bf16.mxu0 0
    %531 = vmatpush1.bf16.msra.mxu0 0
    %532 = vmatprep.subr.bf16.mxu0 0
    %533 = vmatpush1.bf16.msra.mxu0 0
    %534 = vmatprep.subr.bf16.mxu0 0
    %535 = vmatpush1.bf16.msra.mxu0 0
    %536 = vmatprep.subr.bf16.mxu0 0
    %537 = vmatpush1.bf16.msra.mxu0 0
    %538 = vmatprep.subr.bf16.mxu0 0
    %539 = vmatpush1.bf16.msra.mxu0 0
    %540 = vmatprep.mubr.bf16.mxu0 0
    %541 = vmatmul.mubr.bf16.gmra.mrb[0].mxu0 %v506
    %v542 = vpop.f32.mrb[0].mxu0
    %v543 = vadd.f32 0.0, %v542
    %v544 = vpop.f32.mrb[0].mxu0
    %v545 = vpop.f32.mrb[0].mxu0
    %v546 = vpop.f32.mrb[0].mxu0
    %547 = vdwg.mxu0
    %v548 = vadd.f32 %v486, %v543
    %v549 = vxor.u32 %v548, 2147483648
    %v550 = vmul.f32 %v549, 1.442695
    %v551 = vpow.pop %v550
    %v552 = vadd.f32 %v551, 1.0
    %v553 = vrcp.pop %v552
    %v554 = vmul.f32 1.0, %v553
    %v555 = vtanh.pop %v548
    %v556 = vmul.f32 %v554, %v456
    %558 = vrot.lane.b32.xlu0 %v555, 64
    %v559 = vpop.permute.xlu0 %558
    %v561 = vmul.f32 %v554, %v559
    %563 = vrot.lane.b32.xlu0 %v561, 32
    %v564 = vpop.permute.xlu0 %563
    %v566 = vadd.f32 %v556, %v564
    %v567 = vtanh.pop %v566
    %569 = vrot.lane.b32.xlu0 %v567, 64
    %v570 = vpop.permute.xlu0 %569
    %v572 = vmul.f32 %v554, %v570
    %v573 = vpack.c.bf16 %v572, %v572
    %v576 = vunpack.c.l.s4 1966171168
    %v577 = vunpack.c.0.s8 %v576
    %v578 = vlaneseq
    %v579 = vshrl.u32 %v578, 7
    %v580 = vsub.s32 %v577, %v579
    %v581 = vrot.slane %v573, %v580
    %v583 = vunpack.c.l.s4 1966171168
    %v584 = vunpack.c.0.s8 %v583
    %v585 = vlaneseq
    %v586 = vshrl.u32 %v585, 7
    %v587 = vsub.s32 %v584, %v586
    %v588 = vrot.slane %v581, %v587
    %589 = vrot.lane.b32.xlu0 %v588, 32
    %v590 = vpop.permute.xlu0 %589
    %s592 = scalar_lea.vmem %s4, 4
    %593 = vst.msk [vmem:[%s592] sm:$0x1] %vm152, %v590
    %s594 = scalar_lea.vmem %s0, 5
    %v595 = vld [vmem:[%s594] sm:$0x1]
    %v596 = vunpack.c.l.bf16 %v595
    %v597 = vld [vmem:[%s3] sm:$0xf]
    %v598 = vld [vmem:[%s3 + $0x4] sm:$0xf]
    %v599 = vld [vmem:[%s3 + $0x8] sm:$0xf]
    %v600 = vld [vmem:[%s3 + $0xc] sm:$0xf]
    %601 = vrot.lane.b32.xlu0 %v573, 32
    %v602 = vpop.permute.xlu0 %601
    %v607 = vunpack.c.l.b16 %v597
    %v608 = vunpack.c.l.b16 %v598
    %v609 = vunpack.c.l.b16 %v599
    %v610 = vunpack.c.l.b16 %v600
    %v611 = vpack.c.b16 %v608, %v607
    %v612 = vpack.c.b16 %v610, %v609
    %v616 = vsel %vm53, %v602, 0
    %618 = vmatprep.subr.bf16.mxu0 0
    %619 = vmatpush1.bf16.msra.mxu0 %v611
    %620 = vmatprep.subr.bf16.mxu0 0
    %621 = vmatpush1.bf16.msra.mxu0 %v612
    %622 = vmatprep.subr.bf16.mxu0 0
    %623 = vmatpush1.bf16.msra.mxu0 0
    %624 = vmatprep.subr.bf16.mxu0 0
    %625 = vmatpush1.bf16.msra.mxu0 0
    %626 = vmatprep.subr.bf16.mxu0 0
    %627 = vmatpush1.bf16.msra.mxu0 0
    %628 = vmatprep.subr.bf16.mxu0 0
    %629 = vmatpush1.bf16.msra.mxu0 0
    %630 = vmatprep.subr.bf16.mxu0 0
    %631 = vmatpush1.bf16.msra.mxu0 0
    %632 = vmatprep.subr.bf16.mxu0 0
    %633 = vmatpush1.bf16.msra.mxu0 0
    %634 = vmatprep.subr.bf16.mxu0 0
    %635 = vmatpush1.bf16.msra.mxu0 0
    %636 = vmatprep.subr.bf16.mxu0 0
    %637 = vmatpush1.bf16.msra.mxu0 0
    %638 = vmatprep.subr.bf16.mxu0 0
    %639 = vmatpush1.bf16.msra.mxu0 0
    %640 = vmatprep.subr.bf16.mxu0 0
    %641 = vmatpush1.bf16.msra.mxu0 0
    %642 = vmatprep.subr.bf16.mxu0 0
    %643 = vmatpush1.bf16.msra.mxu0 0
    %644 = vmatprep.subr.bf16.mxu0 0
    %645 = vmatpush1.bf16.msra.mxu0 0
    %646 = vmatprep.subr.bf16.mxu0 0
    %647 = vmatpush1.bf16.msra.mxu0 0
    %648 = vmatprep.subr.bf16.mxu0 0
    %649 = vmatpush1.bf16.msra.mxu0 0
    %650 = vmatprep.mubr.bf16.mxu0 0
    %651 = vmatmul.mubr.bf16.gmra.mrb[0].mxu0 %v616
    %v652 = vpop.f32.mrb[0].mxu0
    %v653 = vadd.f32 0.0, %v652
    %v654 = vpop.f32.mrb[0].mxu0
    %v655 = vpop.f32.mrb[0].mxu0
    %v656 = vpop.f32.mrb[0].mxu0
    %657 = vdwg.mxu0
    %v658 = vadd.f32 %v596, %v653
    %v659 = vxor.u32 %v658, 2147483648
    %v660 = vmul.f32 %v659, 1.442695
    %v661 = vpow.pop %v660
    %v662 = vadd.f32 %v661, 1.0
    %v663 = vrcp.pop %v662
    %v664 = vmul.f32 1.0, %v663
    %v665 = vtanh.pop %v658
    %v666 = vmul.f32 %v664, %v566
    %668 = vrot.lane.b32.xlu0 %v665, 64
    %v669 = vpop.permute.xlu0 %668
    %v671 = vmul.f32 %v664, %v669
    %673 = vrot.lane.b32.xlu0 %v671, 32
    %v674 = vpop.permute.xlu0 %673
    %v676 = vadd.f32 %v666, %v674
    %v677 = vtanh.pop %v676
    %679 = vrot.lane.b32.xlu0 %v677, 64
    %v680 = vpop.permute.xlu0 %679
    %v682 = vmul.f32 %v664, %v680
    %v683 = vpack.c.bf16 %v682, %v682
    %v686 = vunpack.c.l.s4 1966171168
    %v687 = vunpack.c.0.s8 %v686
    %v688 = vlaneseq
    %v689 = vshrl.u32 %v688, 7
    %v690 = vsub.s32 %v687, %v689
    %v691 = vrot.slane %v683, %v690
    %v693 = vunpack.c.l.s4 1966171168
    %v694 = vunpack.c.0.s8 %v693
    %v695 = vlaneseq
    %v696 = vshrl.u32 %v695, 7
    %v697 = vsub.s32 %v694, %v696
    %v698 = vrot.slane %v691, %v697
    %699 = vrot.lane.b32.xlu0 %v698, 32
    %v700 = vpop.permute.xlu0 %699
    %s702 = scalar_lea.vmem %s4, 5
    %703 = vst.msk [vmem:[%s702] sm:$0x1] %vm152, %v700
    %s704 = scalar_lea.vmem %s0, 6
    %v705 = vld [vmem:[%s704] sm:$0x1]
    %v706 = vunpack.c.l.bf16 %v705
    %v707 = vld [vmem:[%s3] sm:$0xf]
    %v708 = vld [vmem:[%s3 + $0x4] sm:$0xf]
    %v709 = vld [vmem:[%s3 + $0x8] sm:$0xf]
    %v710 = vld [vmem:[%s3 + $0xc] sm:$0xf]
    %711 = vrot.lane.b32.xlu0 %v683, 32
    %v712 = vpop.permute.xlu0 %711
    %v717 = vunpack.c.l.b16 %v707
    %v718 = vunpack.c.l.b16 %v708
    %v719 = vunpack.c.l.b16 %v709
    %v720 = vunpack.c.l.b16 %v710
    %v721 = vpack.c.b16 %v718, %v717
    %v722 = vpack.c.b16 %v720, %v719
    %v726 = vsel %vm53, %v712, 0
    %728 = vmatprep.subr.bf16.mxu0 0
    %729 = vmatpush1.bf16.msra.mxu0 %v721
    %730 = vmatprep.subr.bf16.mxu0 0
    %731 = vmatpush1.bf16.msra.mxu0 %v722
    %732 = vmatprep.subr.bf16.mxu0 0
    %733 = vmatpush1.bf16.msra.mxu0 0
    %734 = vmatprep.subr.bf16.mxu0 0
    %735 = vmatpush1.bf16.msra.mxu0 0
    %736 = vmatprep.subr.bf16.mxu0 0
    %737 = vmatpush1.bf16.msra.mxu0 0
    %738 = vmatprep.subr.bf16.mxu0 0
    %739 = vmatpush1.bf16.msra.mxu0 0
    %740 = vmatprep.subr.bf16.mxu0 0
    %741 = vmatpush1.bf16.msra.mxu0 0
    %742 = vmatprep.subr.bf16.mxu0 0
    %743 = vmatpush1.bf16.msra.mxu0 0
    %744 = vmatprep.subr.bf16.mxu0 0
    %745 = vmatpush1.bf16.msra.mxu0 0
    %746 = vmatprep.subr.bf16.mxu0 0
    %747 = vmatpush1.bf16.msra.mxu0 0
    %748 = vmatprep.subr.bf16.mxu0 0
    %749 = vmatpush1.bf16.msra.mxu0 0
    %750 = vmatprep.subr.bf16.mxu0 0
    %751 = vmatpush1.bf16.msra.mxu0 0
    %752 = vmatprep.subr.bf16.mxu0 0
    %753 = vmatpush1.bf16.msra.mxu0 0
    %754 = vmatprep.subr.bf16.mxu0 0
    %755 = vmatpush1.bf16.msra.mxu0 0
    %756 = vmatprep.subr.bf16.mxu0 0
    %757 = vmatpush1.bf16.msra.mxu0 0
    %758 = vmatprep.subr.bf16.mxu0 0
    %759 = vmatpush1.bf16.msra.mxu0 0
    %760 = vmatprep.mubr.bf16.mxu0 0
    %761 = vmatmul.mubr.bf16.gmra.mrb[0].mxu0 %v726
    %v762 = vpop.f32.mrb[0].mxu0
    %v763 = vadd.f32 0.0, %v762
    %v764 = vpop.f32.mrb[0].mxu0
    %v765 = vpop.f32.mrb[0].mxu0
    %v766 = vpop.f32.mrb[0].mxu0
    %767 = vdwg.mxu0
    %v768 = vadd.f32 %v706, %v763
    %v769 = vxor.u32 %v768, 2147483648
    %v770 = vmul.f32 %v769, 1.442695
    %v771 = vpow.pop %v770
    %v772 = vadd.f32 %v771, 1.0
    %v773 = vrcp.pop %v772
    %v774 = vmul.f32 1.0, %v773
    %v775 = vtanh.pop %v768
    %v776 = vmul.f32 %v774, %v676
    %778 = vrot.lane.b32.xlu0 %v775, 64
    %v779 = vpop.permute.xlu0 %778
    %v781 = vmul.f32 %v774, %v779
    %783 = vrot.lane.b32.xlu0 %v781, 32
    %v784 = vpop.permute.xlu0 %783
    %v786 = vadd.f32 %v776, %v784
    %v787 = vtanh.pop %v786
    %789 = vrot.lane.b32.xlu0 %v787, 64
    %v790 = vpop.permute.xlu0 %789
    %v792 = vmul.f32 %v774, %v790
    %v793 = vpack.c.bf16 %v792, %v792
    %v796 = vunpack.c.l.s4 1966171168
    %v797 = vunpack.c.0.s8 %v796
    %v798 = vlaneseq
    %v799 = vshrl.u32 %v798, 7
    %v800 = vsub.s32 %v797, %v799
    %v801 = vrot.slane %v793, %v800
    %v803 = vunpack.c.l.s4 1966171168
    %v804 = vunpack.c.0.s8 %v803
    %v805 = vlaneseq
    %v806 = vshrl.u32 %v805, 7
    %v807 = vsub.s32 %v804, %v806
    %v808 = vrot.slane %v801, %v807
    %809 = vrot.lane.b32.xlu0 %v808, 32
    %v810 = vpop.permute.xlu0 %809
    %s812 = scalar_lea.vmem %s4, 6
    %813 = vst.msk [vmem:[%s812] sm:$0x1] %vm152, %v810
    %s814 = scalar_lea.vmem %s0, 7
    %v815 = vld [vmem:[%s814] sm:$0x1]
    %v816 = vunpack.c.l.bf16 %v815
    %v817 = vld [vmem:[%s3] sm:$0xf]
    %v818 = vld [vmem:[%s3 + $0x4] sm:$0xf]
    %v819 = vld [vmem:[%s3 + $0x8] sm:$0xf]
    %v820 = vld [vmem:[%s3 + $0xc] sm:$0xf]
    %821 = vrot.lane.b32.xlu0 %v793, 32
    %v822 = vpop.permute.xlu0 %821
    %v827 = vunpack.c.l.b16 %v817
    %v828 = vunpack.c.l.b16 %v818
    %v829 = vunpack.c.l.b16 %v819
    %v830 = vunpack.c.l.b16 %v820
    %v831 = vpack.c.b16 %v828, %v827
    %v832 = vpack.c.b16 %v830, %v829
    %v836 = vsel %vm53, %v822, 0
    %838 = vmatprep.subr.bf16.mxu0 0
    %839 = vmatpush1.bf16.msra.mxu0 %v831
    %840 = vmatprep.subr.bf16.mxu0 0
    %841 = vmatpush1.bf16.msra.mxu0 %v832
    %842 = vmatprep.subr.bf16.mxu0 0
    %843 = vmatpush1.bf16.msra.mxu0 0
    %844 = vmatprep.subr.bf16.mxu0 0
    %845 = vmatpush1.bf16.msra.mxu0 0
    %846 = vmatprep.subr.bf16.mxu0 0
    %847 = vmatpush1.bf16.msra.mxu0 0
    %848 = vmatprep.subr.bf16.mxu0 0
    %849 = vmatpush1.bf16.msra.mxu0 0
    %850 = vmatprep.subr.bf16.mxu0 0
    %851 = vmatpush1.bf16.msra.mxu0 0
    %852 = vmatprep.subr.bf16.mxu0 0
    %853 = vmatpush1.bf16.msra.mxu0 0
    %854 = vmatprep.subr.bf16.mxu0 0
    %855 = vmatpush1.bf16.msra.mxu0 0
    %856 = vmatprep.subr.bf16.mxu0 0
    %857 = vmatpush1.bf16.msra.mxu0 0
    %858 = vmatprep.subr.bf16.mxu0 0
    %859 = vmatpush1.bf16.msra.mxu0 0
    %860 = vmatprep.subr.bf16.mxu0 0
    %861 = vmatpush1.bf16.msra.mxu0 0
    %862 = vmatprep.subr.bf16.mxu0 0
    %863 = vmatpush1.bf16.msra.mxu0 0
    %864 = vmatprep.subr.bf16.mxu0 0
    %865 = vmatpush1.bf16.msra.mxu0 0
    %866 = vmatprep.subr.bf16.mxu0 0
    %867 = vmatpush1.bf16.msra.mxu0 0
    %868 = vmatprep.subr.bf16.mxu0 0
    %869 = vmatpush1.bf16.msra.mxu0 0
    %870 = vmatprep.mubr.bf16.mxu0 0
    %871 = vmatmul.mubr.bf16.gmra.mrb[0].mxu0 %v836
    %v872 = vpop.f32.mrb[0].mxu0
    %v873 = vadd.f32 0.0, %v872
    %v874 = vpop.f32.mrb[0].mxu0
    %v875 = vpop.f32.mrb[0].mxu0
    %v876 = vpop.f32.mrb[0].mxu0
    %877 = vdwg.mxu0
    %v878 = vadd.f32 %v816, %v873
    %v879 = vxor.u32 %v878, 2147483648
    %v880 = vmul.f32 %v879, 1.442695
    %v881 = vpow.pop %v880
    %v882 = vadd.f32 %v881, 1.0
    %v883 = vrcp.pop %v882
    %v884 = vmul.f32 1.0, %v883
    %v885 = vtanh.pop %v878
    %v886 = vmul.f32 %v884, %v786
    %888 = vrot.lane.b32.xlu0 %v885, 64
    %v889 = vpop.permute.xlu0 %888
    %v891 = vmul.f32 %v884, %v889
    %893 = vrot.lane.b32.xlu0 %v891, 32
    %v894 = vpop.permute.xlu0 %893
    %v896 = vadd.f32 %v886, %v894
    %v897 = vtanh.pop %v896
    %899 = vrot.lane.b32.xlu0 %v897, 64
    %v900 = vpop.permute.xlu0 %899
    %v902 = vmul.f32 %v884, %v900
    %v903 = vpack.c.bf16 %v902, %v902
    %v906 = vunpack.c.l.s4 1966171168
    %v907 = vunpack.c.0.s8 %v906
    %v908 = vlaneseq
    %v909 = vshrl.u32 %v908, 7
    %v910 = vsub.s32 %v907, %v909
    %v911 = vrot.slane %v903, %v910
    %v913 = vunpack.c.l.s4 1966171168
    %v914 = vunpack.c.0.s8 %v913
    %v915 = vlaneseq
    %v916 = vshrl.u32 %v915, 7
    %v917 = vsub.s32 %v914, %v916
    %v918 = vrot.slane %v911, %v917
    %919 = vrot.lane.b32.xlu0 %v918, 32
    %v920 = vpop.permute.xlu0 %919
    %s922 = scalar_lea.vmem %s4, 7
    %923 = vst.msk [vmem:[%s922] sm:$0x1] %vm152, %v920
    %v926 = vunpack.c.l.s4 1983009808
    %v927 = vunpack.c.0.s8 %v926
    %v928 = vlaneseq
    %v929 = vshrl.u32 %v928, 7
    %v930 = vsub.s32 %v927, %v929
    %v931 = vrot.slane %v902, %v930
    %932 = vrot.lane.b32.xlu0 %v931, 32
    %v933 = vpop.permute.xlu0 %932
    %vm935 = vcmask 254976
    %936 = vst.msk [vmem:[#allocation2] sm:$0x3] %vm935, %v933
    %v939 = vunpack.c.l.s4 1983009808
    %v940 = vunpack.c.0.s8 %v939
    %v941 = vlaneseq
    %v942 = vshrl.u32 %v941, 7
    %v943 = vsub.s32 %v940, %v942
    %v944 = vrot.slane %v896, %v943
    %945 = vrot.lane.b32.xlu0 %v944, 96
    %v946 = vpop.permute.xlu0 %945
    %948 = vst.msk [vmem:[#allocation3] sm:$0x3] %vm935, %v946
    // Predicated region
    $region22: #{lstm_decoder_forward.5} parent=1 // pred_check
      %p949 = pneg %p23
    $region23: #{lstm_decoder_forward.5} parent=1 // pred_check_branch
      %951 = sbr.rel (%p949) target = $region25
    $region24: #{lstm_decoder_forward.5} parent=1 // pred_region
      %952 = vst.msk [vmem:[#allocation4] sm:$0x3] %vm935, %v933
      %953 = vst.msk [vmem:[#allocation6] sm:$0x3] %vm935, %v946
    $region25: #{lstm_decoder_forward.5} parent=1 // pred_fallthru
      _
    // Predicated region
    $region26: #{lstm_decoder_forward.5} parent=1 // pred_check
      _
    $region27: #{lstm_decoder_forward.5} parent=1 // pred_check_branch
      %955 = sbr.rel (0) target = $region29
    $region28: #{lstm_decoder_forward.5} parent=1 // pred_region
      _
    $region29: #{lstm_decoder_forward.5} parent=1 // pred_fallthru
      _
    // Predicated region
    $region30: #{lstm_decoder_forward.5} parent=1 // pred_check
      _
    $region31: #{lstm_decoder_forward.5} parent=1 // pred_check_branch
      %957 = sbr.rel (0) target = $region33
    $region32: #{lstm_decoder_forward.5} parent=1 // pred_region
      %s959 = ssub.s32 32, 32
      %960 = vsyncadd [#allocation5], %s959
      %s962 = sshll.u32 [#allocation4], 4
      %s963 = int_to_ptr.vmem [resolvable:$true] %s962
      %965 = dma.vmem_to_hbm [thread:$0]  %s963, 32, %s5, [#allocation5]
    $region33: #{lstm_decoder_forward.5} parent=1 // pred_fallthru
      _
    // Predicated region
    $region34: #{lstm_decoder_forward.5} parent=1 // pred_check
      _
    $region35: #{lstm_decoder_forward.5} parent=1 // pred_check_branch
      %967 = sbr.rel (0) target = $region37
    $region36: #{lstm_decoder_forward.5} parent=1 // pred_region
      %s969 = ssub.s32 32, 32
      %970 = vsyncadd [#allocation7], %s969
      %s972 = sshll.u32 [#allocation6], 4
      %s973 = int_to_ptr.vmem [resolvable:$true] %s972
      %975 = dma.vmem_to_hbm [thread:$0]  %s973, 32, %s6, [#allocation7]
    $region37: #{lstm_decoder_forward.5} parent=1 // pred_fallthru
      _
    // Predicated region
    $region38: #{lstm_decoder_forward.5} parent=1 // pred_check
      _
    $region39: #{lstm_decoder_forward.5} parent=1 // pred_check_branch
      %977 = sbr.rel (0) target = $region41
    $region40: #{lstm_decoder_forward.5} parent=1 // pred_region
      _
    $region41: #{lstm_decoder_forward.5} parent=1 // pred_fallthru
      _
    // Predicated region
    $region42: #{lstm_decoder_forward.5} parent=1 // pred_check
      _
    $region43: #{lstm_decoder_forward.5} parent=1 // pred_check_branch
      %979 = sbr.rel (0) target = $region45
    $region44: #{lstm_decoder_forward.5} parent=1 // pred_region
      %980 = dma.done [#allocation5], 32
    $region45: #{lstm_decoder_forward.5} parent=1 // pred_fallthru
      _
    // Predicated region
    $region46: #{lstm_decoder_forward.5} parent=1 // pred_check
      _
    $region47: #{lstm_decoder_forward.5} parent=1 // pred_check_branch
      %982 = sbr.rel (0) target = $region49
    $region48: #{lstm_decoder_forward.5} parent=1 // pred_region
      %983 = dma.done [#allocation7], 32
    $region49: #{lstm_decoder_forward.5} parent=1 // pred_fallthru
      _
    %984 = vsyncpa [#allocation5], 1
    %985 = vsyncpa [#allocation7], 1

</llo_original>
